<compile_context>
chip_gen: v7x
topology: tpu7x:2x2x1
jax: 0.10.0
libtpu: 0.0.40
codegen_flags: <defaults>
</compile_context>

<pallas_src>
import math

import jax
import jax.numpy as jnp
from jax import lax
from jax.experimental import pallas as pl
from jax.experimental.pallas import tpu as pltpu

LN10 = math.log(10.0)
_SUBLANE = 8
_LANE = 128


def _round_up(x, m):
    return ((x + m - 1) // m) * m


def _pad_gate_cols(w, h, hp):
    """(.., 3h) -> (.., 3hp): each r/z/n gate block moved to a 128-aligned slot."""
    if h == hp:
        return w
    pad = [(0, 0)] * (w.ndim - 1) + [(0, hp - h)]
    parts = [jnp.pad(w[..., g * h:(g + 1) * h], pad) for g in range(3)]
    return jnp.concatenate(parts, axis=-1)


# ---------------------------------------------------------------------------
# Stage 2: sequential GRU recurrence over a chunk of t_blk timesteps.
# ---------------------------------------------------------------------------
def _gru_scan_kernel(gi_ref,      # (t_blk, b_blk, 3Hp) f32   precomputed x@W_ih^T + b_ih
                     whh_ref,     # (Hp, 3Hp) f32             W_hh^T (gate-padded)
                     bhh_ref,     # (1, 3Hp)  f32
                     hs_ref,      # (t_blk, b_blk, Hp) f32     hidden states out
                     h_scratch):  # (b_blk, Hp) f32            carries h across time chunks
    tc = pl.program_id(1)
    t_blk, b_blk, _ = gi_ref.shape
    hp = h_scratch.shape[-1]

    @pl.when(tc == 0)
    def _():
        h_scratch[...] = jnp.zeros_like(h_scratch)

    whh = whh_ref[...]                                            # load once per chunk
    # Hoist the (1,3Hp)->(b_blk,3Hp) bias broadcast out of the unrolled loop.
    bhh = jnp.broadcast_to(bhh_ref[...], (b_blk, bhh_ref.shape[-1]))

    def step(tt, h):
        gi_t = gi_ref[tt]                                         # (b_blk, 3Hp)
        gh = jnp.dot(h, whh, preferred_element_type=jnp.float32) + bhh
        # PyTorch GRU gate equations (gate order: reset, update, new).
        # All slices are 128-lane aligned because hp is a multiple of 128.
        r = jax.nn.sigmoid(gi_t[:, 0:hp] + gh[:, 0:hp])
        z = jax.nn.sigmoid(gi_t[:, hp:2 * hp] + gh[:, hp:2 * hp])
        n = jnp.tanh(gi_t[:, 2 * hp:3 * hp] + r * gh[:, 2 * hp:3 * hp])
        h_new = n + z * (h - n)          # == (1-z)*n + z*h, one fewer VPU op
        hs_ref[tt] = h_new
        return h_new

    h_scratch[...] = lax.fori_loop(0, t_blk, step, h_scratch[...],
                                   unroll=min(t_blk, 8))


# ---------------------------------------------------------------------------
# Stage 3: fc head (Linear -> 10^x -> Linear), parallel over all rows.
# ---------------------------------------------------------------------------
def _head_kernel(hs_ref,    # (r_blk, Hp)
                 w1_ref,    # (Hp, Hp)
                 b1_ref,    # (1, Hp)
                 w2_ref,    # (Hp, Op)
                 b2_ref,    # (1, Op)
                 out_ref):  # (r_blk, Op)
    y = jnp.dot(hs_ref[...], w1_ref[...], preferred_element_type=jnp.float32) + b1_ref[...]
    y = jnp.exp(y * LN10)                                         # ExponentialLayer: 10^x
    y = jnp.dot(y, w2_ref[...], preferred_element_type=jnp.float32) + b2_ref[...]
    out_ref[...] = y.astype(out_ref.dtype)


@jax.jit
def r2dgru_forward(x, params):
    """x: (B, T, input_size) f32 -> (B, T, output_size) f32."""
    B, T, _ = x.shape
    H = params["w_hh_T"].shape[0]
    O = params["w2_T"].shape[1]

    Bp = _round_up(B, _SUBLANE)          # pad batch (sublanes) to a multiple of 8
    Hp = _round_up(H, _LANE)             # lane-aligned hidden / gate blocks
    Op = _round_up(O, _LANE)             # lane-dense head output

    # On v7x (2 TensorCores) set b_chunks = 2 when Bp >= 16 to shard the serial
    # recurrence across cores; single-TC chips (v5e/v6e) keep 1 chunk.
    b_chunks = 1
    b_blk = Bp // b_chunks

    # Size t_blk against a conservative VMEM budget: double-buffered gi + hs
    # blocks in f32 (default scoped VMEM: 16 MiB v5e, 32 MiB v6e/v7x; we also
    # set vmem_limit_bytes=32 MiB below and leave headroom for weights).
    vmem_budget = 8 * 1024 * 1024
    per_step_bytes = 2 * b_blk * (3 * Hp + Hp) * 4
    t_blk = int(max(1, min(T, vmem_budget // per_step_bytes, 128)))
    Tp = _round_up(T, t_blk)

    # ---- gate-padded, lane-aligned parameters (all f32) ----
    w_ih_p = _pad_gate_cols(params["w_ih_T"], H, Hp)                       # (D, 3Hp)
    b_ih_p = _pad_gate_cols(params["b_ih"], H, Hp)                         # (1, 3Hp)
    w_hh_p = jnp.pad(_pad_gate_cols(params["w_hh_T"], H, Hp),
                     ((0, Hp - H), (0, 0)))                                # (Hp, 3Hp)
    b_hh_p = _pad_gate_cols(params["b_hh"], H, Hp)                         # (1, 3Hp)
    w1_p = jnp.pad(params["w1_T"], ((0, Hp - H), (0, Hp - H)))             # (Hp, Hp)
    b1_p = jnp.pad(params["b1"], ((0, 0), (0, Hp - H)))                    # (1, Hp)
    w2_p = jnp.pad(params["w2_T"], ((0, Hp - H), (0, Op - O)))             # (Hp, Op)
    b2_p = jnp.pad(params["b2"], ((0, 0), (0, Op - O)))                    # (1, Op)
    # Padded hidden lanes stay exactly 0 through the recurrence (zero gi/gh/bias
    # -> n = 0, h_new = z*h = 0), and the head's 10^0 = 1 columns hit zero rows
    # of w2_p, so padding never leaks into real outputs.

    # -- Stage 1 (hoisted off the recurrence): input projection, all timesteps.
    #    Transpose/pad the *small* x (not the 3Hp-wide gi) so the big matmul
    #    emits gi directly in its final time-major layout.
    x_p = jnp.pad(x, ((0, Bp - B), (0, 0), (0, 0)))                        # (Bp, T, D)
    x_tm = jnp.transpose(x_p, (1, 0, 2))                                   # (T, Bp, D)
    if Tp != T:
        x_tm = jnp.pad(x_tm, ((0, Tp - T), (0, 0), (0, 0)))
    gi = jnp.einsum("tbd,dg->tbg", x_tm, w_ih_p,
                    preferred_element_type=jnp.float32) + b_ih_p           # (Tp, Bp, 3Hp)

    # -- Stage 2: serial GRU recurrence (Pallas), chunked over time.
    hs = pl.pallas_call(
        _gru_scan_kernel,
        out_shape=jax.ShapeDtypeStruct((Tp, Bp, Hp), jnp.float32),
        grid_spec=pltpu.PrefetchScalarGridSpec(
            num_scalar_prefetch=0,
            grid=(b_chunks, Tp // t_blk),
            in_specs=[
                pl.BlockSpec((t_blk, b_blk, 3 * Hp), lambda bc, tc: (tc, bc, 0)),
                pl.BlockSpec((Hp, 3 * Hp), lambda bc, tc: (0, 0)),
                pl.BlockSpec((1, 3 * Hp), lambda bc, tc: (0, 0)),
            ],
            out_specs=pl.BlockSpec((t_blk, b_blk, Hp), lambda bc, tc: (tc, bc, 0)),
            scratch_shapes=[pltpu.VMEM((b_blk, Hp), jnp.float32)],
        ),
        compiler_params=pltpu.CompilerParams(
            # batch chunks independent (megacore on v7x); time must stay serial
            dimension_semantics=("parallel", "arbitrary"),
            vmem_limit_bytes=32 * 1024 * 1024,
        ),
    )(gi, w_hh_p, b_hh_p)

    # -- Stage 3: fc head over all (Tp*Bp) rows, parallel grid, lane-dense out.
    rows = Tp * Bp
    r_blk = int(min(rows, 1024))
    Rp = _round_up(rows, r_blk)
    hs_flat = hs.reshape(rows, Hp)
    if Rp != rows:
        hs_flat = jnp.pad(hs_flat, ((0, Rp - rows), (0, 0)))

    out_flat = pl.pallas_call(
        _head_kernel,
        out_shape=jax.ShapeDtypeStruct((Rp, Op), jnp.float32),
        grid_spec=pltpu.PrefetchScalarGridSpec(
            num_scalar_prefetch=0,
            grid=(Rp // r_blk,),
            in_specs=[
                pl.BlockSpec((r_blk, Hp), lambda r: (r, 0)),
                pl.BlockSpec((Hp, Hp), lambda r: (0, 0)),
                pl.BlockSpec((1, Hp), lambda r: (0, 0)),
                pl.BlockSpec((Hp, Op), lambda r: (0, 0)),
                pl.BlockSpec((1, Op), lambda r: (0, 0)),
            ],
            out_specs=pl.BlockSpec((r_blk, Op), lambda r: (r, 0)),
        ),
        compiler_params=pltpu.CompilerParams(
            dimension_semantics=("parallel",),    # megacore-shardable on v7x
            vmem_limit_bytes=32 * 1024 * 1024,
        ),
    )(hs_flat, w1_p, b1_p, w2_p, b2_p)

    # Slice away batch/time/output/hidden padding; tiny fused slice+transpose.
    out = out_flat[:rows].reshape(Tp, Bp, Op)[:T, :B, :O]
    return jnp.transpose(out, (1, 0, 2))          # (B, T, O), batch_first


def ref_forward(x, p):
    """Pure-JAX f32 reference matching torch.nn.GRU(batch_first=True) + fc head."""
    B, T, D = x.shape
    H = p["w_hh_T"].shape[0]

    def step(h, x_t):
        gi = x_t @ p["w_ih_T"] + p["b_ih"][0]
        gh = h @ p["w_hh_T"] + p["b_hh"][0]
        r = jax.nn.sigmoid(gi[:, :H] + gh[:, :H])
        z = jax.nn.sigmoid(gi[:, H:2 * H] + gh[:, H:2 * H])
        n = jnp.tanh(gi[:, 2 * H:] + r * gh[:, 2 * H:])
        h_new = (1.0 - z) * n + z * h
        return h_new, h_new

    _, hs = jax.lax.scan(step, jnp.zeros((B, H), jnp.float32),
                         jnp.transpose(x, (1, 0, 2)))
    hs = jnp.transpose(hs, (1, 0, 2))                     # (B, T, H)
    y = hs @ p["w1_T"] + p["b1"][0]
    y = jnp.exp(y * LN10)                                 # ExponentialLayer: 10^x
    y = y @ p["w2_T"] + p["b2"][0]
    return y


def init_params(key, input_size, hidden_size, output_size):
    """Deterministic init mimicking PyTorch's uniform(-1/sqrt(H), 1/sqrt(H))."""
    ks = jax.random.split(key, 8)
    s = 1.0 / math.sqrt(hidden_size)
    u = lambda k, shape: jax.random.uniform(k, shape, jnp.float32, -s, s)
    H, D, O = hidden_size, input_size, output_size
    return {
        # stored pre-transposed: x @ W^T layouts (gate order r, z, n)
        "w_ih_T": u(ks[0], (D, 3 * H)),
        "w_hh_T": u(ks[1], (H, 3 * H)),
        "b_ih":   u(ks[2], (1, 3 * H)),
        "b_hh":   u(ks[3], (1, 3 * H)),
        "w1_T":   u(ks[4], (H, H)),
        "b1":     u(ks[5], (1, H)),
        "w2_T":   u(ks[6], (H, O)),
        "b2":     u(ks[7], (1, O)),
    }


if __name__ == "__main__":
    B, T, INPUT, HIDDEN, OUTPUT = 2, 8, 4, 32, 16

    key = jax.random.PRNGKey(0)
    k_x, k_p = jax.random.split(key)
    x = jax.random.normal(k_x, (B, T, INPUT), jnp.float32)
    params = init_params(k_p, INPUT, HIDDEN, OUTPUT)

    out = r2dgru_forward(x, params)
    jax.block_until_ready(out)
    assert out.shape == (B, T, OUTPUT)

    ref = ref_forward(x, params)
    err = jnp.max(jnp.abs(out - ref)) / (jnp.max(jnp.abs(ref)) + 1e-6)
    assert float(err) < 5e-3, f"mismatch vs reference: rel err {float(err)}"

    print("KERNEL_OK")
</pallas_src>

<mosaic_0001>
module attributes {stable_mosaic.version = 11 : i64} {
  func.func @_head_kernel(%arg0: i32, %arg1: memref<64x128xf32, #tpu.memory_space<vmem>>, %arg2: memref<128x128xf32, #tpu.memory_space<vmem>>, %arg3: memref<1x128xf32, #tpu.memory_space<vmem>>, %arg4: memref<128x128xf32, #tpu.memory_space<vmem>>, %arg5: memref<1x128xf32, #tpu.memory_space<vmem>>, %arg6: memref<64x128xf32, #tpu.memory_space<vmem>>) attributes {dimension_semantics = [#tpu.dimension_semantics<parallel>], iteration_bounds = array<i64: 1>, scalar_prefetch = 0 : i64, scratch_operands = 0 : i64, tpu.core_type = #tpu.core_type<tc>, window_params = [{transform_indices = @transform_0, window_bounds = array<i64: 64, 128>}, {pipeline_mode = #tpu.pipeline_mode<synchronous>, transform_indices = @transform_1, window_bounds = array<i64: 128, 128>}, {pipeline_mode = #tpu.pipeline_mode<synchronous>, transform_indices = @transform_2, window_bounds = array<i64: 1, 128>}, {pipeline_mode = #tpu.pipeline_mode<synchronous>, transform_indices = @transform_3, window_bounds = array<i64: 128, 128>}, {pipeline_mode = #tpu.pipeline_mode<synchronous>, transform_indices = @transform_4, window_bounds = array<i64: 1, 128>}, {transform_indices = @transform_5, window_bounds = array<i64: 64, 128>}]} {
    %c0 = arith.constant 0 : index
    %c0_0 = arith.constant 0 : index
    %0 = vector.load %arg1[%c0, %c0_0] : memref<64x128xf32, #tpu.memory_space<vmem>>, vector<64x128xf32>
    %c0_1 = arith.constant 0 : index
    %c0_2 = arith.constant 0 : index
    %1 = vector.load %arg2[%c0_1, %c0_2] : memref<128x128xf32, #tpu.memory_space<vmem>>, vector<128x128xf32>
    %cst = arith.constant dense<0.000000e+00> : vector<64x128xf32>
    %2 = tpu.matmul %0, %1, %cst {dimension_numbers = #tpu.dot_dimension_numbers<[1], [0], [0], [1], [0, 0, 1, 1], [], []>} : vector<64x128xf32>, vector<128x128xf32>, vector<64x128xf32> -> vector<64x128xf32>
    %c0_3 = arith.constant 0 : index
    %c0_4 = arith.constant 0 : index
    %3 = vector.load %arg3[%c0_3, %c0_4] : memref<1x128xf32, #tpu.memory_space<vmem>>, vector<1x128xf32>
    %4 = vector.broadcast %3 : vector<1x128xf32> to vector<64x128xf32>
    %5 = arith.addf %2, %4 : vector<64x128xf32>
    %cst_5 = arith.constant 2.30258512 : f32
    %6 = vector.broadcast %cst_5 : f32 to vector<64x128xf32>
    %7 = arith.mulf %5, %6 : vector<64x128xf32>
    %8 = math.exp %7 : vector<64x128xf32>
    %c0_6 = arith.constant 0 : index
    %c0_7 = arith.constant 0 : index
    %9 = vector.load %arg4[%c0_6, %c0_7] : memref<128x128xf32, #tpu.memory_space<vmem>>, vector<128x128xf32>
    %cst_8 = arith.constant dense<0.000000e+00> : vector<64x128xf32>
    %10 = tpu.matmul %8, %9, %cst_8 {dimension_numbers = #tpu.dot_dimension_numbers<[1], [0], [0], [1], [0, 0, 1, 1], [], []>} : vector<64x128xf32>, vector<128x128xf32>, vector<64x128xf32> -> vector<64x128xf32>
    %c0_9 = arith.constant 0 : index
    %c0_10 = arith.constant 0 : index
    %11 = vector.load %arg5[%c0_9, %c0_10] : memref<1x128xf32, #tpu.memory_space<vmem>>, vector<1x128xf32>
    %12 = vector.broadcast %11 : vector<1x128xf32> to vector<64x128xf32>
    %13 = arith.addf %10, %12 : vector<64x128xf32>
    %c0_11 = arith.constant 0 : index
    %c0_12 = arith.constant 0 : index
    %14 = vector.load %arg6[%c0_11, %c0_12] : memref<64x128xf32, #tpu.memory_space<vmem>>, vector<64x128xf32>
    tpu.vector_store %arg6[%c0_11, %c0_12], %13 {strides = array<i32>} : memref<64x128xf32, #tpu.memory_space<vmem>>, vector<64x128xf32>,
    return
  }
  func.func @transform_0(%arg0: i32) -> (i32, i32) {
    %c0_i32 = arith.constant 0 : i32
    %c0_i32_0 = arith.constant 0 : i32
    return %arg0, %c0_i32 : i32, i32
  }
  func.func @transform_1(%arg0: i32) -> (i32, i32) {
    %c0_i32 = arith.constant 0 : i32
    %c0_i32_0 = arith.constant 0 : i32
    %c0_i32_1 = arith.constant 0 : i32
    return %c0_i32, %c0_i32_0 : i32, i32
  }
  func.func @transform_2(%arg0: i32) -> (i32, i32) {
    %c0_i32 = arith.constant 0 : i32
    %c0_i32_0 = arith.constant 0 : i32
    %c0_i32_1 = arith.constant 0 : i32
    return %c0_i32, %c0_i32_0 : i32, i32
  }
  func.func @transform_3(%arg0: i32) -> (i32, i32) {
    %c0_i32 = arith.constant 0 : i32
    %c0_i32_0 = arith.constant 0 : i32
    %c0_i32_1 = arith.constant 0 : i32
    return %c0_i32, %c0_i32_0 : i32, i32
  }
  func.func @transform_4(%arg0: i32) -> (i32, i32) {
    %c0_i32 = arith.constant 0 : i32
    %c0_i32_0 = arith.constant 0 : i32
    %c0_i32_1 = arith.constant 0 : i32
    return %c0_i32, %c0_i32_0 : i32, i32
  }
  func.func @transform_5(%arg0: i32) -> (i32, i32) {
    %c0_i32 = arith.constant 0 : i32
    %c0_i32_0 = arith.constant 0 : i32
    return %arg0, %c0_i32 : i32, i32
  }
}

module attributes {stable_mosaic.version = 11 : i64} {
  func.func @_gru_scan_kernel(%arg0: i32, %arg1: i32, %arg2: memref<8x8x384xf32, #tpu.memory_space<vmem>>, %arg3: memref<128x384xf32, #tpu.memory_space<vmem>>, %arg4: memref<1x384xf32, #tpu.memory_space<vmem>>, %arg5: memref<8x8x128xf32, #tpu.memory_space<vmem>>, %arg6: memref<8x128xf32, #tpu.memory_space<vmem>>) attributes {dimension_semantics = [#tpu.dimension_semantics<parallel>, #tpu.dimension_semantics<arbitrary>], iteration_bounds = array<i64: 1, 1>, scalar_prefetch = 0 : i64, scratch_operands = 1 : i64, tpu.core_type = #tpu.core_type<tc>, window_params = [{transform_indices = @transform_0, window_bounds = array<i64: 8, 8, 384>}, {pipeline_mode = #tpu.pipeline_mode<synchronous>, transform_indices = @transform_1, window_bounds = array<i64: 128, 384>}, {pipeline_mode = #tpu.pipeline_mode<synchronous>, transform_indices = @transform_2, window_bounds = array<i64: 1, 384>}, {transform_indices = @transform_3, window_bounds = array<i64: 8, 8, 128>}]} {
    %c0_i32 = arith.constant 0 : i32
    %0 = arith.cmpi eq, %arg1, %c0_i32 : i32
    %1 = arith.extui %0 : i1 to i32
    %c0_i32_0 = arith.constant 0 : i32
    %2 = arith.cmpi ne, %1, %c0_i32_0 : i32
    scf.if %2 {
      %cst_64 = arith.constant 0.000000e+00 : f32
      %273 = vector.broadcast %cst_64 : f32 to vector<8x128xf32>
      %c0_65 = arith.constant 0 : index
      %c0_66 = arith.constant 0 : index
      %274 = vector.load %arg6[%c0_65, %c0_66] : memref<8x128xf32, #tpu.memory_space<vmem>>, vector<8x128xf32>
      tpu.vector_store %arg6[%c0_65, %c0_66], %273 {strides = array<i32>} : memref<8x128xf32, #tpu.memory_space<vmem>>, vector<8x128xf32>,
    } else {
    }
    %c0 = arith.constant 0 : index
    %c0_1 = arith.constant 0 : index
    %3 = vector.load %arg3[%c0, %c0_1] : memref<128x384xf32, #tpu.memory_space<vmem>>, vector<128x384xf32>
    %c0_2 = arith.constant 0 : index
    %c0_3 = arith.constant 0 : index
    %4 = vector.load %arg4[%c0_2, %c0_3] : memref<1x384xf32, #tpu.memory_space<vmem>>, vector<1x384xf32>
    %5 = vector.shape_cast %4 : vector<1x384xf32> to vector<1x384xf32>
    %6 = vector.broadcast %5 : vector<1x384xf32> to vector<8x384xf32>
    %c0_4 = arith.constant 0 : index
    %c0_5 = arith.constant 0 : index
    %7 = vector.load %arg6[%c0_4, %c0_5] : memref<8x128xf32, #tpu.memory_space<vmem>>, vector<8x128xf32>
    %c0_i32_6 = arith.constant 0 : i32
    %8 = arith.index_cast %c0_i32_6 : i32 to index
    %c0_7 = arith.constant 0 : index
    %c0_8 = arith.constant 0 : index
    %9 = vector.load %arg2[%8, %c0_7, %c0_8] : memref<8x8x384xf32, #tpu.memory_space<vmem>>, vector<1x8x384xf32>
    %10 = vector.shape_cast %9 : vector<1x8x384xf32> to vector<8x384xf32>
    %cst = arith.constant dense<0.000000e+00> : vector<8x384xf32>
    %11 = tpu.matmul %7, %3, %cst {dimension_numbers = #tpu.dot_dimension_numbers<[1], [0], [0], [1], [0, 0, 1, 1], [], []>} : vector<8x128xf32>, vector<128x384xf32>, vector<8x384xf32> -> vector<8x384xf32>
    %12 = arith.addf %11, %6 : vector<8x384xf32>
    %13 = vector.extract_strided_slice %10 {offsets = [0, 0], sizes = [8, 128], strides = [1, 1]} : vector<8x384xf32> to vector<8x128xf32>
    %14 = vector.extract_strided_slice %12 {offsets = [0, 0], sizes = [8, 128], strides = [1, 1]} : vector<8x384xf32> to vector<8x128xf32>
    %15 = arith.addf %13, %14 : vector<8x128xf32>
    %16 = arith.negf %15 : vector<8x128xf32>
    %17 = math.exp %16 : vector<8x128xf32>
    %cst_9 = arith.constant 1.000000e+00 : f32
    %18 = vector.broadcast %cst_9 : f32 to vector<8x128xf32>
    %19 = arith.addf %18, %17 : vector<8x128xf32>
    %20 = arith.divf %18, %19 : vector<8x128xf32>
    %21 = vector.extract_strided_slice %10 {offsets = [0, 128], sizes = [8, 128], strides = [1, 1]} : vector<8x384xf32> to vector<8x128xf32>
    %22 = vector.extract_strided_slice %12 {offsets = [0, 128], sizes = [8, 128], strides = [1, 1]} : vector<8x384xf32> to vector<8x128xf32>
    %23 = arith.addf %21, %22 : vector<8x128xf32>
    %24 = arith.negf %23 : vector<8x128xf32>
    %25 = math.exp %24 : vector<8x128xf32>
    %cst_10 = arith.constant 1.000000e+00 : f32
    %26 = vector.broadcast %cst_10 : f32 to vector<8x128xf32>
    %27 = arith.addf %26, %25 : vector<8x128xf32>
    %28 = arith.divf %26, %27 : vector<8x128xf32>
    %29 = vector.extract_strided_slice %10 {offsets = [0, 256], sizes = [8, 128], strides = [1, 1]} : vector<8x384xf32> to vector<8x128xf32>
    %30 = vector.extract_strided_slice %12 {offsets = [0, 256], sizes = [8, 128], strides = [1, 1]} : vector<8x384xf32> to vector<8x128xf32>
    %31 = arith.mulf %20, %30 : vector<8x128xf32>
    %32 = arith.addf %29, %31 : vector<8x128xf32>
    %33 = math.tanh %32 : vector<8x128xf32>
    %34 = arith.subf %7, %33 : vector<8x128xf32>
    %35 = arith.mulf %28, %34 : vector<8x128xf32>
    %36 = arith.addf %33, %35 : vector<8x128xf32>
    %37 = arith.index_cast %c0_i32_6 : i32 to index
    %c0_11 = arith.constant 0 : index
    %c0_12 = arith.constant 0 : index
    %38 = vector.load %arg5[%37, %c0_11, %c0_12] : memref<8x8x128xf32, #tpu.memory_space<vmem>>, vector<1x8x128xf32>
    %39 = vector.shape_cast %38 : vector<1x8x128xf32> to vector<8x128xf32>
    %40 = vector.shape_cast %36 : vector<8x128xf32> to vector<1x8x128xf32>
    tpu.vector_store %arg5[%37, %c0_11, %c0_12], %40 {strides = array<i32>} : memref<8x8x128xf32, #tpu.memory_space<vmem>>, vector<1x8x128xf32>,
    %c1_i32 = arith.constant 1 : i32
    %41 = arith.index_cast %c1_i32 : i32 to index
    %c0_13 = arith.constant 0 : index
    %c0_14 = arith.constant 0 : index
    %42 = vector.load %arg2[%41, %c0_13, %c0_14] : memref<8x8x384xf32, #tpu.memory_space<vmem>>, vector<1x8x384xf32>
    %43 = vector.shape_cast %42 : vector<1x8x384xf32> to vector<8x384xf32>
    %cst_15 = arith.constant dense<0.000000e+00> : vector<8x384xf32>
    %44 = tpu.matmul %36, %3, %cst_15 {dimension_numbers = #tpu.dot_dimension_numbers<[1], [0], [0], [1], [0, 0, 1, 1], [], []>} : vector<8x128xf32>, vector<128x384xf32>, vector<8x384xf32> -> vector<8x384xf32>
    %45 = arith.addf %44, %6 : vector<8x384xf32>
    %46 = vector.extract_strided_slice %43 {offsets = [0, 0], sizes = [8, 128], strides = [1, 1]} : vector<8x384xf32> to vector<8x128xf32>
    %47 = vector.extract_strided_slice %45 {offsets = [0, 0], sizes = [8, 128], strides = [1, 1]} : vector<8x384xf32> to vector<8x128xf32>
    %48 = arith.addf %46, %47 : vector<8x128xf32>
    %49 = arith.negf %48 : vector<8x128xf32>
    %50 = math.exp %49 : vector<8x128xf32>
    %cst_16 = arith.constant 1.000000e+00 : f32
    %51 = vector.broadcast %cst_16 : f32 to vector<8x128xf32>
    %52 = arith.addf %51, %50 : vector<8x128xf32>
    %53 = arith.divf %51, %52 : vector<8x128xf32>
    %54 = vector.extract_strided_slice %43 {offsets = [0, 128], sizes = [8, 128], strides = [1, 1]} : vector<8x384xf32> to vector<8x128xf32>
    %55 = vector.extract_strided_slice %45 {offsets = [0, 128], sizes = [8, 128], strides = [1, 1]} : vector<8x384xf32> to vector<8x128xf32>
    %56 = arith.addf %54, %55 : vector<8x128xf32>
    %57 = arith.negf %56 : vector<8x128xf32>
    %58 = math.exp %57 : vector<8x128xf32>
    %cst_17 = arith.constant 1.000000e+00 : f32
    %59 = vector.broadcast %cst_17 : f32 to vector<8x128xf32>
    %60 = arith.addf %59, %58 : vector<8x128xf32>
    %61 = arith.divf %59, %60 : vector<8x128xf32>
    %62 = vector.extract_strided_slice %43 {offsets = [0, 256], sizes = [8, 128], strides = [1, 1]} : vector<8x384xf32> to vector<8x128xf32>
    %63 = vector.extract_strided_slice %45 {offsets = [0, 256], sizes = [8, 128], strides = [1, 1]} : vector<8x384xf32> to vector<8x128xf32>
    %64 = arith.mulf %53, %63 : vector<8x128xf32>
    %65 = arith.addf %62, %64 : vector<8x128xf32>
    %66 = math.tanh %65 : vector<8x128xf32>
    %67 = arith.subf %36, %66 : vector<8x128xf32>
    %68 = arith.mulf %61, %67 : vector<8x128xf32>
    %69 = arith.addf %66, %68 : vector<8x128xf32>
    %70 = arith.index_cast %c1_i32 : i32 to index
    %c0_18 = arith.constant 0 : index
    %c0_19 = arith.constant 0 : index
    %71 = vector.load %arg5[%70, %c0_18, %c0_19] : memref<8x8x128xf32, #tpu.memory_space<vmem>>, vector<1x8x128xf32>
    %72 = vector.shape_cast %71 : vector<1x8x128xf32> to vector<8x128xf32>
    %73 = vector.shape_cast %69 : vector<8x128xf32> to vector<1x8x128xf32>
    tpu.vector_store %arg5[%70, %c0_18, %c0_19], %73 {strides = array<i32>} : memref<8x8x128xf32, #tpu.memory_space<vmem>>, vector<1x8x128xf32>,
    %c2_i32 = arith.constant 2 : i32
    %74 = arith.index_cast %c2_i32 : i32 to index
    %c0_20 = arith.constant 0 : index
    %c0_21 = arith.constant 0 : index
    %75 = vector.load %arg2[%74, %c0_20, %c0_21] : memref<8x8x384xf32, #tpu.memory_space<vmem>>, vector<1x8x384xf32>
    %76 = vector.shape_cast %75 : vector<1x8x384xf32> to vector<8x384xf32>
    %cst_22 = arith.constant dense<0.000000e+00> : vector<8x384xf32>
    %77 = tpu.matmul %69, %3, %cst_22 {dimension_numbers = #tpu.dot_dimension_numbers<[1], [0], [0], [1], [0, 0, 1, 1], [], []>} : vector<8x128xf32>, vector<128x384xf32>, vector<8x384xf32> -> vector<8x384xf32>
    %78 = arith.addf %77, %6 : vector<8x384xf32>
    %79 = vector.extract_strided_slice %76 {offsets = [0, 0], sizes = [8, 128], strides = [1, 1]} : vector<8x384xf32> to vector<8x128xf32>
    %80 = vector.extract_strided_slice %78 {offsets = [0, 0], sizes = [8, 128], strides = [1, 1]} : vector<8x384xf32> to vector<8x128xf32>
    %81 = arith.addf %79, %80 : vector<8x128xf32>
    %82 = arith.negf %81 : vector<8x128xf32>
    %83 = math.exp %82 : vector<8x128xf32>
    %cst_23 = arith.constant 1.000000e+00 : f32
    %84 = vector.broadcast %cst_23 : f32 to vector<8x128xf32>
    %85 = arith.addf %84, %83 : vector<8x128xf32>
    %86 = arith.divf %84, %85 : vector<8x128xf32>
    %87 = vector.extract_strided_slice %76 {offsets = [0, 128], sizes = [8, 128], strides = [1, 1]} : vector<8x384xf32> to vector<8x128xf32>
    %88 = vector.extract_strided_slice %78 {offsets = [0, 128], sizes = [8, 128], strides = [1, 1]} : vector<8x384xf32> to vector<8x128xf32>
    %89 = arith.addf %87, %88 : vector<8x128xf32>
    %90 = arith.negf %89 : vector<8x128xf32>
    %91 = math.exp %90 : vector<8x128xf32>
    %cst_24 = arith.constant 1.000000e+00 : f32
    %92 = vector.broadcast %cst_24 : f32 to vector<8x128xf32>
    %93 = arith.addf %92, %91 : vector<8x128xf32>
    %94 = arith.divf %92, %93 : vector<8x128xf32>
    %95 = vector.extract_strided_slice %76 {offsets = [0, 256], sizes = [8, 128], strides = [1, 1]} : vector<8x384xf32> to vector<8x128xf32>
    %96 = vector.extract_strided_slice %78 {offsets = [0, 256], sizes = [8, 128], strides = [1, 1]} : vector<8x384xf32> to vector<8x128xf32>
    %97 = arith.mulf %86, %96 : vector<8x128xf32>
    %98 = arith.addf %95, %97 : vector<8x128xf32>
    %99 = math.tanh %98 : vector<8x128xf32>
    %100 = arith.subf %69, %99 : vector<8x128xf32>
    %101 = arith.mulf %94, %100 : vector<8x128xf32>
    %102 = arith.addf %99, %101 : vector<8x128xf32>
    %103 = arith.index_cast %c2_i32 : i32 to index
    %c0_25 = arith.constant 0 : index
    %c0_26 = arith.constant 0 : index
    %104 = vector.load %arg5[%103, %c0_25, %c0_26] : memref<8x8x128xf32, #tpu.memory_space<vmem>>, vector<1x8x128xf32>
    %105 = vector.shape_cast %104 : vector<1x8x128xf32> to vector<8x128xf32>
    %106 = vector.shape_cast %102 : vector<8x128xf32> to vector<1x8x128xf32>
    tpu.vector_store %arg5[%103, %c0_25, %c0_26], %106 {strides = array<i32>} : memref<8x8x128xf32, #tpu.memory_space<vmem>>, vector<1x8x128xf32>,
    %c3_i32 = arith.constant 3 : i32
    %107 = arith.index_cast %c3_i32 : i32 to index
    %c0_27 = arith.constant 0 : index
    %c0_28 = arith.constant 0 : index
    %108 = vector.load %arg2[%107, %c0_27, %c0_28] : memref<8x8x384xf32, #tpu.memory_space<vmem>>, vector<1x8x384xf32>
    %109 = vector.shape_cast %108 : vector<1x8x384xf32> to vector<8x384xf32>
    %cst_29 = arith.constant dense<0.000000e+00> : vector<8x384xf32>
    %110 = tpu.matmul %102, %3, %cst_29 {dimension_numbers = #tpu.dot_dimension_numbers<[1], [0], [0], [1], [0, 0, 1, 1], [], []>} : vector<8x128xf32>, vector<128x384xf32>, vector<8x384xf32> -> vector<8x384xf32>
    %111 = arith.addf %110, %6 : vector<8x384xf32>
    %112 = vector.extract_strided_slice %109 {offsets = [0, 0], sizes = [8, 128], strides = [1, 1]} : vector<8x384xf32> to vector<8x128xf32>
    %113 = vector.extract_strided_slice %111 {offsets = [0, 0], sizes = [8, 128], strides = [1, 1]} : vector<8x384xf32> to vector<8x128xf32>
    %114 = arith.addf %112, %113 : vector<8x128xf32>
    %115 = arith.negf %114 : vector<8x128xf32>
    %116 = math.exp %115 : vector<8x128xf32>
    %cst_30 = arith.constant 1.000000e+00 : f32
    %117 = vector.broadcast %cst_30 : f32 to vector<8x128xf32>
    %118 = arith.addf %117, %116 : vector<8x128xf32>
    %119 = arith.divf %117, %118 : vector<8x128xf32>
    %120 = vector.extract_strided_slice %109 {offsets = [0, 128], sizes = [8, 128], strides = [1, 1]} : vector<8x384xf32> to vector<8x128xf32>
    %121 = vector.extract_strided_slice %111 {offsets = [0, 128], sizes = [8, 128], strides = [1, 1]} : vector<8x384xf32> to vector<8x128xf32>
    %122 = arith.addf %120, %121 : vector<8x128xf32>
    %123 = arith.negf %122 : vector<8x128xf32>
    %124 = math.exp %123 : vector<8x128xf32>
    %cst_31 = arith.constant 1.000000e+00 : f32
    %125 = vector.broadcast %cst_31 : f32 to vector<8x128xf32>
    %126 = arith.addf %125, %124 : vector<8x128xf32>
    %127 = arith.divf %125, %126 : vector<8x128xf32>
    %128 = vector.extract_strided_slice %109 {offsets = [0, 256], sizes = [8, 128], strides = [1, 1]} : vector<8x384xf32> to vector<8x128xf32>
    %129 = vector.extract_strided_slice %111 {offsets = [0, 256], sizes = [8, 128], strides = [1, 1]} : vector<8x384xf32> to vector<8x128xf32>
    %130 = arith.mulf %119, %129 : vector<8x128xf32>
    %131 = arith.addf %128, %130 : vector<8x128xf32>
    %132 = math.tanh %131 : vector<8x128xf32>
    %133 = arith.subf %102, %132 : vector<8x128xf32>
    %134 = arith.mulf %127, %133 : vector<8x128xf32>
    %135 = arith.addf %132, %134 : vector<8x128xf32>
    %136 = arith.index_cast %c3_i32 : i32 to index
    %c0_32 = arith.constant 0 : index
    %c0_33 = arith.constant 0 : index
    %137 = vector.load %arg5[%136, %c0_32, %c0_33] : memref<8x8x128xf32, #tpu.memory_space<vmem>>, vector<1x8x128xf32>
    %138 = vector.shape_cast %137 : vector<1x8x128xf32> to vector<8x128xf32>
    %139 = vector.shape_cast %135 : vector<8x128xf32> to vector<1x8x128xf32>
    tpu.vector_store %arg5[%136, %c0_32, %c0_33], %139 {strides = array<i32>} : memref<8x8x128xf32, #tpu.memory_space<vmem>>, vector<1x8x128xf32>,
    %c4_i32 = arith.constant 4 : i32
    %140 = arith.index_cast %c4_i32 : i32 to index
    %c0_34 = arith.constant 0 : index
    %c0_35 = arith.constant 0 : index
    %141 = vector.load %arg2[%140, %c0_34, %c0_35] : memref<8x8x384xf32, #tpu.memory_space<vmem>>, vector<1x8x384xf32>
    %142 = vector.shape_cast %141 : vector<1x8x384xf32> to vector<8x384xf32>
    %cst_36 = arith.constant dense<0.000000e+00> : vector<8x384xf32>
    %143 = tpu.matmul %135, %3, %cst_36 {dimension_numbers = #tpu.dot_dimension_numbers<[1], [0], [0], [1], [0, 0, 1, 1], [], []>} : vector<8x128xf32>, vector<128x384xf32>, vector<8x384xf32> -> vector<8x384xf32>
    %144 = arith.addf %143, %6 : vector<8x384xf32>
    %145 = vector.extract_strided_slice %142 {offsets = [0, 0], sizes = [8, 128], strides = [1, 1]} : vector<8x384xf32> to vector<8x128xf32>
    %146 = vector.extract_strided_slice %144 {offsets = [0, 0], sizes = [8, 128], strides = [1, 1]} : vector<8x384xf32> to vector<8x128xf32>
    %147 = arith.addf %145, %146 : vector<8x128xf32>
    %148 = arith.negf %147 : vector<8x128xf32>
    %149 = math.exp %148 : vector<8x128xf32>
    %cst_37 = arith.constant 1.000000e+00 : f32
    %150 = vector.broadcast %cst_37 : f32 to vector<8x128xf32>
    %151 = arith.addf %150, %149 : vector<8x128xf32>
    %152 = arith.divf %150, %151 : vector<8x128xf32>
    %153 = vector.extract_strided_slice %142 {offsets = [0, 128], sizes = [8, 128], strides = [1, 1]} : vector<8x384xf32> to vector<8x128xf32>
    %154 = vector.extract_strided_slice %144 {offsets = [0, 128], sizes = [8, 128], strides = [1, 1]} : vector<8x384xf32> to vector<8x128xf32>
    %155 = arith.addf %153, %154 : vector<8x128xf32>
    %156 = arith.negf %155 : vector<8x128xf32>
    %157 = math.exp %156 : vector<8x128xf32>
    %cst_38 = arith.constant 1.000000e+00 : f32
    %158 = vector.broadcast %cst_38 : f32 to vector<8x128xf32>
    %159 = arith.addf %158, %157 : vector<8x128xf32>
    %160 = arith.divf %158, %159 : vector<8x128xf32>
    %161 = vector.extract_strided_slice %142 {offsets = [0, 256], sizes = [8, 128], strides = [1, 1]} : vector<8x384xf32> to vector<8x128xf32>
    %162 = vector.extract_strided_slice %144 {offsets = [0, 256], sizes = [8, 128], strides = [1, 1]} : vector<8x384xf32> to vector<8x128xf32>
    %163 = arith.mulf %152, %162 : vector<8x128xf32>
    %164 = arith.addf %161, %163 : vector<8x128xf32>
    %165 = math.tanh %164 : vector<8x128xf32>
    %166 = arith.subf %135, %165 : vector<8x128xf32>
    %167 = arith.mulf %160, %166 : vector<8x128xf32>
    %168 = arith.addf %165, %167 : vector<8x128xf32>
    %169 = arith.index_cast %c4_i32 : i32 to index
    %c0_39 = arith.constant 0 : index
    %c0_40 = arith.constant 0 : index
    %170 = vector.load %arg5[%169, %c0_39, %c0_40] : memref<8x8x128xf32, #tpu.memory_space<vmem>>, vector<1x8x128xf32>
    %171 = vector.shape_cast %170 : vector<1x8x128xf32> to vector<8x128xf32>
    %172 = vector.shape_cast %168 : vector<8x128xf32> to vector<1x8x128xf32>
    tpu.vector_store %arg5[%169, %c0_39, %c0_40], %172 {strides = array<i32>} : memref<8x8x128xf32, #tpu.memory_space<vmem>>, vector<1x8x128xf32>,
    %c5_i32 = arith.constant 5 : i32
    %173 = arith.index_cast %c5_i32 : i32 to index
    %c0_41 = arith.constant 0 : index
    %c0_42 = arith.constant 0 : index
    %174 = vector.load %arg2[%173, %c0_41, %c0_42] : memref<8x8x384xf32, #tpu.memory_space<vmem>>, vector<1x8x384xf32>
    %175 = vector.shape_cast %174 : vector<1x8x384xf32> to vector<8x384xf32>
    %cst_43 = arith.constant dense<0.000000e+00> : vector<8x384xf32>
    %176 = tpu.matmul %168, %3, %cst_43 {dimension_numbers = #tpu.dot_dimension_numbers<[1], [0], [0], [1], [0, 0, 1, 1], [], []>} : vector<8x128xf32>, vector<128x384xf32>, vector<8x384xf32> -> vector<8x384xf32>
    %177 = arith.addf %176, %6 : vector<8x384xf32>
    %178 = vector.extract_strided_slice %175 {offsets = [0, 0], sizes = [8, 128], strides = [1, 1]} : vector<8x384xf32> to vector<8x128xf32>
    %179 = vector.extract_strided_slice %177 {offsets = [0, 0], sizes = [8, 128], strides = [1, 1]} : vector<8x384xf32> to vector<8x128xf32>
    %180 = arith.addf %178, %179 : vector<8x128xf32>
    %181 = arith.negf %180 : vector<8x128xf32>
    %182 = math.exp %181 : vector<8x128xf32>
    %cst_44 = arith.constant 1.000000e+00 : f32
    %183 = vector.broadcast %cst_44 : f32 to vector<8x128xf32>
    %184 = arith.addf %183, %182 : vector<8x128xf32>
    %185 = arith.divf %183, %184 : vector<8x128xf32>
    %186 = vector.extract_strided_slice %175 {offsets = [0, 128], sizes = [8, 128], strides = [1, 1]} : vector<8x384xf32> to vector<8x128xf32>
    %187 = vector.extract_strided_slice %177 {offsets = [0, 128], sizes = [8, 128], strides = [1, 1]} : vector<8x384xf32> to vector<8x128xf32>
    %188 = arith.addf %186, %187 : vector<8x128xf32>
    %189 = arith.negf %188 : vector<8x128xf32>
    %190 = math.exp %189 : vector<8x128xf32>
    %cst_45 = arith.constant 1.000000e+00 : f32
    %191 = vector.broadcast %cst_45 : f32 to vector<8x128xf32>
    %192 = arith.addf %191, %190 : vector<8x128xf32>
    %193 = arith.divf %191, %192 : vector<8x128xf32>
    %194 = vector.extract_strided_slice %175 {offsets = [0, 256], sizes = [8, 128], strides = [1, 1]} : vector<8x384xf32> to vector<8x128xf32>
    %195 = vector.extract_strided_slice %177 {offsets = [0, 256], sizes = [8, 128], strides = [1, 1]} : vector<8x384xf32> to vector<8x128xf32>
    %196 = arith.mulf %185, %195 : vector<8x128xf32>
    %197 = arith.addf %194, %196 : vector<8x128xf32>
    %198 = math.tanh %197 : vector<8x128xf32>
    %199 = arith.subf %168, %198 : vector<8x128xf32>
    %200 = arith.mulf %193, %199 : vector<8x128xf32>
    %201 = arith.addf %198, %200 : vector<8x128xf32>
    %202 = arith.index_cast %c5_i32 : i32 to index
    %c0_46 = arith.constant 0 : index
    %c0_47 = arith.constant 0 : index
    %203 = vector.load %arg5[%202, %c0_46, %c0_47] : memref<8x8x128xf32, #tpu.memory_space<vmem>>, vector<1x8x128xf32>
    %204 = vector.shape_cast %203 : vector<1x8x128xf32> to vector<8x128xf32>
    %205 = vector.shape_cast %201 : vector<8x128xf32> to vector<1x8x128xf32>
    tpu.vector_store %arg5[%202, %c0_46, %c0_47], %205 {strides = array<i32>} : memref<8x8x128xf32, #tpu.memory_space<vmem>>, vector<1x8x128xf32>,
    %c6_i32 = arith.constant 6 : i32
    %206 = arith.index_cast %c6_i32 : i32 to index
    %c0_48 = arith.constant 0 : index
    %c0_49 = arith.constant 0 : index
    %207 = vector.load %arg2[%206, %c0_48, %c0_49] : memref<8x8x384xf32, #tpu.memory_space<vmem>>, vector<1x8x384xf32>
    %208 = vector.shape_cast %207 : vector<1x8x384xf32> to vector<8x384xf32>
    %cst_50 = arith.constant dense<0.000000e+00> : vector<8x384xf32>
    %209 = tpu.matmul %201, %3, %cst_50 {dimension_numbers = #tpu.dot_dimension_numbers<[1], [0], [0], [1], [0, 0, 1, 1], [], []>} : vector<8x128xf32>, vector<128x384xf32>, vector<8x384xf32> -> vector<8x384xf32>
    %210 = arith.addf %209, %6 : vector<8x384xf32>
    %211 = vector.extract_strided_slice %208 {offsets = [0, 0], sizes = [8, 128], strides = [1, 1]} : vector<8x384xf32> to vector<8x128xf32>
    %212 = vector.extract_strided_slice %210 {offsets = [0, 0], sizes = [8, 128], strides = [1, 1]} : vector<8x384xf32> to vector<8x128xf32>
    %213 = arith.addf %211, %212 : vector<8x128xf32>
    %214 = arith.negf %213 : vector<8x128xf32>
    %215 = math.exp %214 : vector<8x128xf32>
    %cst_51 = arith.constant 1.000000e+00 : f32
    %216 = vector.broadcast %cst_51 : f32 to vector<8x128xf32>
    %217 = arith.addf %216, %215 : vector<8x128xf32>
    %218 = arith.divf %216, %217 : vector<8x128xf32>
    %219 = vector.extract_strided_slice %208 {offsets = [0, 128], sizes = [8, 128], strides = [1, 1]} : vector<8x384xf32> to vector<8x128xf32>
    %220 = vector.extract_strided_slice %210 {offsets = [0, 128], sizes = [8, 128], strides = [1, 1]} : vector<8x384xf32> to vector<8x128xf32>
    %221 = arith.addf %219, %220 : vector<8x128xf32>
    %222 = arith.negf %221 : vector<8x128xf32>
    %223 = math.exp %222 : vector<8x128xf32>
    %cst_52 = arith.constant 1.000000e+00 : f32
    %224 = vector.broadcast %cst_52 : f32 to vector<8x128xf32>
    %225 = arith.addf %224, %223 : vector<8x128xf32>
    %226 = arith.divf %224, %225 : vector<8x128xf32>
    %227 = vector.extract_strided_slice %208 {offsets = [0, 256], sizes = [8, 128], strides = [1, 1]} : vector<8x384xf32> to vector<8x128xf32>
    %228 = vector.extract_strided_slice %210 {offsets = [0, 256], sizes = [8, 128], strides = [1, 1]} : vector<8x384xf32> to vector<8x128xf32>
    %229 = arith.mulf %218, %228 : vector<8x128xf32>
    %230 = arith.addf %227, %229 : vector<8x128xf32>
    %231 = math.tanh %230 : vector<8x128xf32>
    %232 = arith.subf %201, %231 : vector<8x128xf32>
    %233 = arith.mulf %226, %232 : vector<8x128xf32>
    %234 = arith.addf %231, %233 : vector<8x128xf32>
    %235 = arith.index_cast %c6_i32 : i32 to index
    %c0_53 = arith.constant 0 : index
    %c0_54 = arith.constant 0 : index
    %236 = vector.load %arg5[%235, %c0_53, %c0_54] : memref<8x8x128xf32, #tpu.memory_space<vmem>>, vector<1x8x128xf32>
    %237 = vector.shape_cast %236 : vector<1x8x128xf32> to vector<8x128xf32>
    %238 = vector.shape_cast %234 : vector<8x128xf32> to vector<1x8x128xf32>
    tpu.vector_store %arg5[%235, %c0_53, %c0_54], %238 {strides = array<i32>} : memref<8x8x128xf32, #tpu.memory_space<vmem>>, vector<1x8x128xf32>,
    %c7_i32 = arith.constant 7 : i32
    %239 = arith.index_cast %c7_i32 : i32 to index
    %c0_55 = arith.constant 0 : index
    %c0_56 = arith.constant 0 : index
    %240 = vector.load %arg2[%239, %c0_55, %c0_56] : memref<8x8x384xf32, #tpu.memory_space<vmem>>, vector<1x8x384xf32>
    %241 = vector.shape_cast %240 : vector<1x8x384xf32> to vector<8x384xf32>
    %cst_57 = arith.constant dense<0.000000e+00> : vector<8x384xf32>
    %242 = tpu.matmul %234, %3, %cst_57 {dimension_numbers = #tpu.dot_dimension_numbers<[1], [0], [0], [1], [0, 0, 1, 1], [], []>} : vector<8x128xf32>, vector<128x384xf32>, vector<8x384xf32> -> vector<8x384xf32>
    %243 = arith.addf %242, %6 : vector<8x384xf32>
    %244 = vector.extract_strided_slice %241 {offsets = [0, 0], sizes = [8, 128], strides = [1, 1]} : vector<8x384xf32> to vector<8x128xf32>
    %245 = vector.extract_strided_slice %243 {offsets = [0, 0], sizes = [8, 128], strides = [1, 1]} : vector<8x384xf32> to vector<8x128xf32>
    %246 = arith.addf %244, %245 : vector<8x128xf32>
    %247 = arith.negf %246 : vector<8x128xf32>
    %248 = math.exp %247 : vector<8x128xf32>
    %cst_58 = arith.constant 1.000000e+00 : f32
    %249 = vector.broadcast %cst_58 : f32 to vector<8x128xf32>
    %250 = arith.addf %249, %248 : vector<8x128xf32>
    %251 = arith.divf %249, %250 : vector<8x128xf32>
    %252 = vector.extract_strided_slice %241 {offsets = [0, 128], sizes = [8, 128], strides = [1, 1]} : vector<8x384xf32> to vector<8x128xf32>
    %253 = vector.extract_strided_slice %243 {offsets = [0, 128], sizes = [8, 128], strides = [1, 1]} : vector<8x384xf32> to vector<8x128xf32>
    %254 = arith.addf %252, %253 : vector<8x128xf32>
    %255 = arith.negf %254 : vector<8x128xf32>
    %256 = math.exp %255 : vector<8x128xf32>
    %cst_59 = arith.constant 1.000000e+00 : f32
    %257 = vector.broadcast %cst_59 : f32 to vector<8x128xf32>
    %258 = arith.addf %257, %256 : vector<8x128xf32>
    %259 = arith.divf %257, %258 : vector<8x128xf32>
    %260 = vector.extract_strided_slice %241 {offsets = [0, 256], sizes = [8, 128], strides = [1, 1]} : vector<8x384xf32> to vector<8x128xf32>
    %261 = vector.extract_strided_slice %243 {offsets = [0, 256], sizes = [8, 128], strides = [1, 1]} : vector<8x384xf32> to vector<8x128xf32>
    %262 = arith.mulf %251, %261 : vector<8x128xf32>
    %263 = arith.addf %260, %262 : vector<8x128xf32>
    %264 = math.tanh %263 : vector<8x128xf32>
    %265 = arith.subf %234, %264 : vector<8x128xf32>
    %266 = arith.mulf %259, %265 : vector<8x128xf32>
    %267 = arith.addf %264, %266 : vector<8x128xf32>
    %268 = arith.index_cast %c7_i32 : i32 to index
    %c0_60 = arith.constant 0 : index
    %c0_61 = arith.constant 0 : index
    %269 = vector.load %arg5[%268, %c0_60, %c0_61] : memref<8x8x128xf32, #tpu.memory_space<vmem>>, vector<1x8x128xf32>
    %270 = vector.shape_cast %269 : vector<1x8x128xf32> to vector<8x128xf32>
    %271 = vector.shape_cast %267 : vector<8x128xf32> to vector<1x8x128xf32>
    tpu.vector_store %arg5[%268, %c0_60, %c0_61], %271 {strides = array<i32>} : memref<8x8x128xf32, #tpu.memory_space<vmem>>, vector<1x8x128xf32>,
    %c8_i32 = arith.constant 8 : i32
    %c0_62 = arith.constant 0 : index
    %c0_63 = arith.constant 0 : index
    %272 = vector.load %arg6[%c0_62, %c0_63] : memref<8x128xf32, #tpu.memory_space<vmem>>, vector<8x128xf32>
    tpu.vector_store %arg6[%c0_62, %c0_63], %267 {strides = array<i32>} : memref<8x128xf32, #tpu.memory_space<vmem>>, vector<8x128xf32>,
    return
  }
  func.func @transform_0(%arg0: i32, %arg1: i32) -> (i32, i32, i32) {
    %c0_i32 = arith.constant 0 : i32
    %c0_i32_0 = arith.constant 0 : i32
    return %arg1, %arg0, %c0_i32 : i32, i32, i32
  }
  func.func @transform_1(%arg0: i32, %arg1: i32) -> (i32, i32) {
    %c0_i32 = arith.constant 0 : i32
    %c0_i32_0 = arith.constant 0 : i32
    %c0_i32_1 = arith.constant 0 : i32
    return %c0_i32, %c0_i32_0 : i32, i32
  }
  func.func @transform_2(%arg0: i32, %arg1: i32) -> (i32, i32) {
    %c0_i32 = arith.constant 0 : i32
    %c0_i32_0 = arith.constant 0 : i32
    %c0_i32_1 = arith.constant 0 : i32
    return %c0_i32, %c0_i32_0 : i32, i32
  }
  func.func @transform_3(%arg0: i32, %arg1: i32) -> (i32, i32, i32) {
    %c0_i32 = arith.constant 0 : i32
    %c0_i32_0 = arith.constant 0 : i32
    return %arg1, %arg0, %c0_i32 : i32, i32, i32
  }
}

</mosaic_0001>

<llo_original>
// kernel: r2dgru_forward.3
$region0: #{r2dgru_forward.3}
  #allocation0 [shape = 'u32[]', space=smem, size = 0x4, offset = 0x4, fixed_abs, tag = 'smem constant byte address 0x4 - core index']
  #allocation1 [shape = 'u32[144,128]{1,0:T(1,128)}', space=vmem, size = 0x12000, scoped, tag = 'internal scratch']
  %s0 = inlined_call_operand.vmem [shape: f32[64,128], index: 0, kind: input, shape index: {}]
  %s1 = inlined_call_operand.vmem [shape: f32[128,128], index: 1, kind: input, shape index: {}]
  %s2 = inlined_call_operand.vmem [shape: f32[1,128], index: 2, kind: input, shape index: {}]
  %s3 = inlined_call_operand.vmem [shape: f32[128,128], index: 3, kind: input, shape index: {}]
  %s4 = inlined_call_operand.vmem [shape: f32[1,128], index: 4, kind: input, shape index: {}]
  %s5 = inlined_call_operand.vmem [shape: f32[64,128], index: 5, kind: output, shape index: {}]
  %s6 = sld [smem:[#allocation0]]
  $region30: #{r2dgru_forward.3} parent=0
    _
  %s8 = ssub.s32 1, %s6
  %s9 = scalar_select 0, %s8, %s6
  // Predicated region
  $region2: #{r2dgru_forward.3} parent=0 // pred_check
    _
  $region3: #{r2dgru_forward.3} parent=0 // pred_check_branch
    %11 = sbr.rel (0) target = $region5
  $region4: #{r2dgru_forward.3} parent=0 // pred_region
    _
  $region5: #{r2dgru_forward.3} parent=0 // pred_fallthru
    _
  // Predicated region
  $region6: #{r2dgru_forward.3} parent=0 // pred_check
    _
  $region7: #{r2dgru_forward.3} parent=0 // pred_check_branch
    %13 = sbr.rel (0) target = $region9
  $region8: #{r2dgru_forward.3} parent=0 // pred_region
    _
  $region9: #{r2dgru_forward.3} parent=0 // pred_fallthru
    _
  // Predicated region
  $region10: #{r2dgru_forward.3} parent=0 // pred_check
    _
  $region11: #{r2dgru_forward.3} parent=0 // pred_check_branch
    %15 = sbr.rel (0) target = $region13
  $region12: #{r2dgru_forward.3} parent=0 // pred_region
    _
  $region13: #{r2dgru_forward.3} parent=0 // pred_fallthru
    _
  // Predicated region
  $region14: #{r2dgru_forward.3} parent=0 // pred_check
    _
  $region15: #{r2dgru_forward.3} parent=0 // pred_check_branch
    %17 = sbr.rel (0) target = $region17
  $region16: #{r2dgru_forward.3} parent=0 // pred_region
    _
  $region17: #{r2dgru_forward.3} parent=0 // pred_fallthru
    _
  // Predicated region
  $region18: #{r2dgru_forward.3} parent=0 // pred_check
    _
  $region19: #{r2dgru_forward.3} parent=0 // pred_check_branch
    %19 = sbr.rel (0) target = $region21
  $region20: #{r2dgru_forward.3} parent=0 // pred_region
    _
  $region21: #{r2dgru_forward.3} parent=0 // pred_fallthru
    _
  %v20 = vld [vmem:[%s0] sm:$0xff]
  %v21 = vld [vmem:[%s0 + $0x8] sm:$0xff]
  %v22 = vld [vmem:[%s0 + $0x10] sm:$0xff]
  %v23 = vld [vmem:[%s0 + $0x18] sm:$0xff]
  %v24 = vld [vmem:[%s0 + $0x20] sm:$0xff]
  %v25 = vld [vmem:[%s0 + $0x28] sm:$0xff]
  %v26 = vld [vmem:[%s0 + $0x30] sm:$0xff]
  %v27 = vld [vmem:[%s0 + $0x38] sm:$0xff]
  %v28 = vld [vmem:[%s1] sm:$0xff]
  %v29 = vld [vmem:[%s1 + $0x8] sm:$0xff]
  %v30 = vld [vmem:[%s1 + $0x10] sm:$0xff]
  %v31 = vld [vmem:[%s1 + $0x18] sm:$0xff]
  %v32 = vld [vmem:[%s1 + $0x20] sm:$0xff]
  %v33 = vld [vmem:[%s1 + $0x28] sm:$0xff]
  %v34 = vld [vmem:[%s1 + $0x30] sm:$0xff]
  %v35 = vld [vmem:[%s1 + $0x38] sm:$0xff]
  %v36 = vld [vmem:[%s1 + $0x40] sm:$0xff]
  %v37 = vld [vmem:[%s1 + $0x48] sm:$0xff]
  %v38 = vld [vmem:[%s1 + $0x50] sm:$0xff]
  %v39 = vld [vmem:[%s1 + $0x58] sm:$0xff]
  %v40 = vld [vmem:[%s1 + $0x60] sm:$0xff]
  %v41 = vld [vmem:[%s1 + $0x68] sm:$0xff]
  %v42 = vld [vmem:[%s1 + $0x70] sm:$0xff]
  %v43 = vld [vmem:[%s1 + $0x78] sm:$0xff]
  %v44 = vld [vmem:[%s2] sm:$0x1]
  %v46 = vlaneseq
  %v47 = vshrl.u32 %v46, 7
  %v48 = vsub.s32 0, %v47
  %v49 = vrot.slane %v44, %v48
  %51 = vmatprep.subr.mxu0 0.0
  %52 = vmatpush1.msra.mxu0 %v28
  %53 = vmatprep.subr.mxu0 0.0
  %54 = vmatpush1.msra.mxu0 %v29
  %55 = vmatprep.subr.mxu0 0.0
  %56 = vmatpush1.msra.mxu0 %v30
  %57 = vmatprep.subr.mxu0 0.0
  %58 = vmatpush1.msra.mxu0 %v31
  %59 = vmatprep.subr.mxu0 0.0
  %60 = vmatpush1.msra.mxu0 %v32
  %61 = vmatprep.subr.mxu0 0.0
  %62 = vmatpush1.msra.mxu0 %v33
  %63 = vmatprep.subr.mxu0 0.0
  %64 = vmatpush1.msra.mxu0 %v34
  %65 = vmatprep.subr.mxu0 0.0
  %66 = vmatpush1.msra.mxu0 %v35
  %67 = vmatprep.subr.mxu0 0.0
  %68 = vmatpush1.msra.mxu0 %v36
  %69 = vmatprep.subr.mxu0 0.0
  %70 = vmatpush1.msra.mxu0 %v37
  %71 = vmatprep.subr.mxu0 0.0
  %72 = vmatpush1.msra.mxu0 %v38
  %73 = vmatprep.subr.mxu0 0.0
  %74 = vmatpush1.msra.mxu0 %v39
  %75 = vmatprep.subr.mxu0 0.0
  %76 = vmatpush1.msra.mxu0 %v40
  %77 = vmatprep.subr.mxu0 0.0
  %78 = vmatpush1.msra.mxu0 %v41
  %79 = vmatprep.subr.mxu0 0.0
  %80 = vmatpush1.msra.mxu0 %v42
  %81 = vmatprep.subr.mxu0 0.0
  %82 = vmatpush1.msra.mxu0 %v43
  %83 = vmatprep.subr.mxu0 0.0
  %84 = vmatpush1.msra.mxu0 0.0
  %85 = vmatprep.subr.mxu0 0.0
  %86 = vmatpush1.msra.mxu0 0.0
  %87 = vmatprep.subr.mxu0 0.0
  %88 = vmatpush1.msra.mxu0 0.0
  %89 = vmatprep.subr.mxu0 0.0
  %90 = vmatpush1.msra.mxu0 0.0
  %91 = vmatprep.subr.mxu0 0.0
  %92 = vmatpush1.msra.mxu0 0.0
  %93 = vmatprep.subr.mxu0 0.0
  %94 = vmatpush1.msra.mxu0 0.0
  %95 = vmatprep.subr.mxu0 0.0
  %96 = vmatpush1.msra.mxu0 0.0
  %97 = vmatprep.subr.mxu0 0.0
  %98 = vmatpush1.msra.mxu0 0.0
  %99 = vmatprep.subr.mxu0 0.0
  %100 = vmatpush1.msra.mxu0 0.0
  %101 = vmatprep.subr.mxu0 0.0
  %102 = vmatpush1.msra.mxu0 0.0
  %103 = vmatprep.subr.mxu0 0.0
  %104 = vmatpush1.msra.mxu0 0.0
  %105 = vmatprep.subr.mxu0 0.0
  %106 = vmatpush1.msra.mxu0 0.0
  %107 = vmatprep.subr.mxu0 0.0
  %108 = vmatpush1.msra.mxu0 0.0
  %109 = vmatprep.subr.mxu0 0.0
  %110 = vmatpush1.msra.mxu0 0.0
  %111 = vmatprep.subr.mxu0 0.0
  %112 = vmatpush1.msra.mxu0 0.0
  %113 = vmatprep.subr.mxu0 0.0
  %114 = vmatpush1.msra.mxu0 0.0
  %115 = vmatprep.mubr.f32.mxu0 0.0
  %116 = vmatmul.mubr.f32.gmra.mrb[0].mxu0 %v20
  %v117 = vpop.f32.mrb[0].mxu0
  %v118 = vadd.f32 %v49, %v117
  %v119 = vpop.f32.mrb[0].mxu0
  %120 = vmatprep.mubr.f32.mxu0 0.0
  %121 = vmatmul.mubr.f32.gmra.mrb[0].mxu0 %v21
  %v122 = vpop.f32.mrb[0].mxu0
  %v123 = vadd.f32 %v49, %v122
  %v124 = vpop.f32.mrb[0].mxu0
  %125 = vmatprep.mubr.f32.mxu0 0.0
  %126 = vmatmul.mubr.f32.gmra.mrb[0].mxu0 %v22
  %v127 = vpop.f32.mrb[0].mxu0
  %v128 = vadd.f32 %v49, %v127
  %v129 = vpop.f32.mrb[0].mxu0
  %130 = vmatprep.mubr.f32.mxu0 0.0
  %131 = vmatmul.mubr.f32.gmra.mrb[0].mxu0 %v23
  %v132 = vpop.f32.mrb[0].mxu0
  %v133 = vadd.f32 %v49, %v132
  %v134 = vpop.f32.mrb[0].mxu0
  %135 = vmatprep.mubr.f32.mxu0 0.0
  %136 = vmatmul.mubr.f32.gmra.mrb[0].mxu0 %v24
  %v137 = vpop.f32.mrb[0].mxu0
  %v138 = vadd.f32 %v49, %v137
  %v139 = vpop.f32.mrb[0].mxu0
  %140 = vmatprep.mubr.f32.mxu0 0.0
  %141 = vmatmul.mubr.f32.gmra.mrb[0].mxu0 %v25
  %v142 = vpop.f32.mrb[0].mxu0
  %v143 = vadd.f32 %v49, %v142
  %v144 = vpop.f32.mrb[0].mxu0
  %145 = vmatprep.mubr.f32.mxu0 0.0
  %146 = vmatmul.mubr.f32.gmra.mrb[0].mxu0 %v26
  %v147 = vpop.f32.mrb[0].mxu0
  %v148 = vadd.f32 %v49, %v147
  %v149 = vpop.f32.mrb[0].mxu0
  %150 = vmatprep.mubr.f32.mxu0 0.0
  %151 = vmatmul.mubr.f32.gmra.mrb[0].mxu0 %v27
  %v152 = vpop.f32.mrb[0].mxu0
  %v153 = vadd.f32 %v49, %v152
  %v154 = vpop.f32.mrb[0].mxu0
  %155 = vdwg.mxu0
  %v156 = vmul.f32 %v118, 2.3025851
  %v157 = vmul.f32 %v123, 2.3025851
  %v158 = vmul.f32 %v128, 2.3025851
  %v159 = vmul.f32 %v133, 2.3025851
  %v160 = vmul.f32 %v138, 2.3025851
  %v161 = vmul.f32 %v143, 2.3025851
  %v162 = vmul.f32 %v148, 2.3025851
  %v163 = vmul.f32 %v153, 2.3025851
  %v164 = vmul.f32 %v156, 1.442695
  %v165 = vpow.pop %v164
  %v166 = vmul.f32 %v157, 1.442695
  %v167 = vpow.pop %v166
  %v168 = vmul.f32 %v158, 1.442695
  %v169 = vpow.pop %v168
  %v170 = vmul.f32 %v159, 1.442695
  %v171 = vpow.pop %v170
  %v172 = vmul.f32 %v160, 1.442695
  %v173 = vpow.pop %v172
  %v174 = vmul.f32 %v161, 1.442695
  %v175 = vpow.pop %v174
  %v176 = vmul.f32 %v162, 1.442695
  %v177 = vpow.pop %v176
  %v178 = vmul.f32 %v163, 1.442695
  %v179 = vpow.pop %v178
  %v180 = vld [vmem:[%s3] sm:$0xff]
  %v181 = vld [vmem:[%s3 + $0x8] sm:$0xff]
  %v182 = vld [vmem:[%s3 + $0x10] sm:$0xff]
  %v183 = vld [vmem:[%s3 + $0x18] sm:$0xff]
  %v184 = vld [vmem:[%s3 + $0x20] sm:$0xff]
  %v185 = vld [vmem:[%s3 + $0x28] sm:$0xff]
  %v186 = vld [vmem:[%s3 + $0x30] sm:$0xff]
  %v187 = vld [vmem:[%s3 + $0x38] sm:$0xff]
  %v188 = vld [vmem:[%s3 + $0x40] sm:$0xff]
  %v189 = vld [vmem:[%s3 + $0x48] sm:$0xff]
  %v190 = vld [vmem:[%s3 + $0x50] sm:$0xff]
  %v191 = vld [vmem:[%s3 + $0x58] sm:$0xff]
  %v192 = vld [vmem:[%s3 + $0x60] sm:$0xff]
  %v193 = vld [vmem:[%s3 + $0x68] sm:$0xff]
  %v194 = vld [vmem:[%s3 + $0x70] sm:$0xff]
  %v195 = vld [vmem:[%s3 + $0x78] sm:$0xff]
  %v196 = vld [vmem:[%s4] sm:$0x1]
  %v198 = vlaneseq
  %v199 = vshrl.u32 %v198, 7
  %v200 = vsub.s32 0, %v199
  %v201 = vrot.slane %v196, %v200
  %203 = vmatprep.subr.mxu0 0.0
  %204 = vmatpush1.msra.mxu0 %v180
  %205 = vmatprep.subr.mxu0 0.0
  %206 = vmatpush1.msra.mxu0 %v181
  %207 = vmatprep.subr.mxu0 0.0
  %208 = vmatpush1.msra.mxu0 %v182
  %209 = vmatprep.subr.mxu0 0.0
  %210 = vmatpush1.msra.mxu0 %v183
  %211 = vmatprep.subr.mxu0 0.0
  %212 = vmatpush1.msra.mxu0 %v184
  %213 = vmatprep.subr.mxu0 0.0
  %214 = vmatpush1.msra.mxu0 %v185
  %215 = vmatprep.subr.mxu0 0.0
  %216 = vmatpush1.msra.mxu0 %v186
  %217 = vmatprep.subr.mxu0 0.0
  %218 = vmatpush1.msra.mxu0 %v187
  %219 = vmatprep.subr.mxu0 0.0
  %220 = vmatpush1.msra.mxu0 %v188
  %221 = vmatprep.subr.mxu0 0.0
  %222 = vmatpush1.msra.mxu0 %v189
  %223 = vmatprep.subr.mxu0 0.0
  %224 = vmatpush1.msra.mxu0 %v190
  %225 = vmatprep.subr.mxu0 0.0
  %226 = vmatpush1.msra.mxu0 %v191
  %227 = vmatprep.subr.mxu0 0.0
  %228 = vmatpush1.msra.mxu0 %v192
  %229 = vmatprep.subr.mxu0 0.0
  %230 = vmatpush1.msra.mxu0 %v193
  %231 = vmatprep.subr.mxu0 0.0
  %232 = vmatpush1.msra.mxu0 %v194
  %233 = vmatprep.subr.mxu0 0.0
  %234 = vmatpush1.msra.mxu0 %v195
  %235 = vmatprep.subr.mxu0 0.0
  %236 = vmatpush1.msra.mxu0 0.0
  %237 = vmatprep.subr.mxu0 0.0
  %238 = vmatpush1.msra.mxu0 0.0
  %239 = vmatprep.subr.mxu0 0.0
  %240 = vmatpush1.msra.mxu0 0.0
  %241 = vmatprep.subr.mxu0 0.0
  %242 = vmatpush1.msra.mxu0 0.0
  %243 = vmatprep.subr.mxu0 0.0
  %244 = vmatpush1.msra.mxu0 0.0
  %245 = vmatprep.subr.mxu0 0.0
  %246 = vmatpush1.msra.mxu0 0.0
  %247 = vmatprep.subr.mxu0 0.0
  %248 = vmatpush1.msra.mxu0 0.0
  %249 = vmatprep.subr.mxu0 0.0
  %250 = vmatpush1.msra.mxu0 0.0
  %251 = vmatprep.subr.mxu0 0.0
  %252 = vmatpush1.msra.mxu0 0.0
  %253 = vmatprep.subr.mxu0 0.0
  %254 = vmatpush1.msra.mxu0 0.0
  %255 = vmatprep.subr.mxu0 0.0
  %256 = vmatpush1.msra.mxu0 0.0
  %257 = vmatprep.subr.mxu0 0.0
  %258 = vmatpush1.msra.mxu0 0.0
  %259 = vmatprep.subr.mxu0 0.0
  %260 = vmatpush1.msra.mxu0 0.0
  %261 = vmatprep.subr.mxu0 0.0
  %262 = vmatpush1.msra.mxu0 0.0
  %263 = vmatprep.subr.mxu0 0.0
  %264 = vmatpush1.msra.mxu0 0.0
  %265 = vmatprep.subr.mxu0 0.0
  %266 = vmatpush1.msra.mxu0 0.0
  %267 = vmatprep.mubr.f32.mxu0 0.0
  %268 = vmatmul.mubr.f32.gmra.mrb[0].mxu0 %v165
  %v269 = vpop.f32.mrb[0].mxu0
  %v270 = vadd.f32 %v201, %v269
  %v271 = vpop.f32.mrb[0].mxu0
  %272 = vmatprep.mubr.f32.mxu0 0.0
  %273 = vmatmul.mubr.f32.gmra.mrb[0].mxu0 %v167
  %v274 = vpop.f32.mrb[0].mxu0
  %v275 = vadd.f32 %v201, %v274
  %v276 = vpop.f32.mrb[0].mxu0
  %277 = vmatprep.mubr.f32.mxu0 0.0
  %278 = vmatmul.mubr.f32.gmra.mrb[0].mxu0 %v169
  %v279 = vpop.f32.mrb[0].mxu0
  %v280 = vadd.f32 %v201, %v279
  %v281 = vpop.f32.mrb[0].mxu0
  %282 = vmatprep.mubr.f32.mxu0 0.0
  %283 = vmatmul.mubr.f32.gmra.mrb[0].mxu0 %v171
  %v284 = vpop.f32.mrb[0].mxu0
  %v285 = vadd.f32 %v201, %v284
  %v286 = vpop.f32.mrb[0].mxu0
  %287 = vmatprep.mubr.f32.mxu0 0.0
  %288 = vmatmul.mubr.f32.gmra.mrb[0].mxu0 %v173
  %v289 = vpop.f32.mrb[0].mxu0
  %v290 = vadd.f32 %v201, %v289
  %v291 = vpop.f32.mrb[0].mxu0
  %292 = vmatprep.mubr.f32.mxu0 0.0
  %293 = vmatmul.mubr.f32.gmra.mrb[0].mxu0 %v175
  %v294 = vpop.f32.mrb[0].mxu0
  %v295 = vadd.f32 %v201, %v294
  %v296 = vpop.f32.mrb[0].mxu0
  %297 = vmatprep.mubr.f32.mxu0 0.0
  %298 = vmatmul.mubr.f32.gmra.mrb[0].mxu0 %v177
  %v299 = vpop.f32.mrb[0].mxu0
  %v300 = vadd.f32 %v201, %v299
  %v301 = vpop.f32.mrb[0].mxu0
  %302 = vmatprep.mubr.f32.mxu0 0.0
  %303 = vmatmul.mubr.f32.gmra.mrb[0].mxu0 %v179
  %v304 = vpop.f32.mrb[0].mxu0
  %v305 = vadd.f32 %v201, %v304
  %v306 = vpop.f32.mrb[0].mxu0
  %307 = vdwg.mxu0
  %308 = vst [vmem:[%s5] sm:$0xff] %v270
  %309 = vst [vmem:[%s5 + $0x8] sm:$0xff] %v275
  %310 = vst [vmem:[%s5 + $0x10] sm:$0xff] %v280
  %311 = vst [vmem:[%s5 + $0x18] sm:$0xff] %v285
  %312 = vst [vmem:[%s5 + $0x20] sm:$0xff] %v290
  %313 = vst [vmem:[%s5 + $0x28] sm:$0xff] %v295
  %314 = vst [vmem:[%s5 + $0x30] sm:$0xff] %v300
  %315 = vst [vmem:[%s5 + $0x38] sm:$0xff] %v305
  // Predicated region
  $region22: #{r2dgru_forward.3} parent=0 // pred_check
    _
  $region23: #{r2dgru_forward.3} parent=0 // pred_check_branch
    %317 = sbr.rel (0) target = $region25
  $region24: #{r2dgru_forward.3} parent=0 // pred_region
    _
  $region25: #{r2dgru_forward.3} parent=0 // pred_fallthru
    _
  // Predicated region
  $region26: #{r2dgru_forward.3} parent=0 // pred_check
    _
  $region27: #{r2dgru_forward.3} parent=0 // pred_check_branch
    %319 = sbr.rel (0) target = $region29
  $region28: #{r2dgru_forward.3} parent=0 // pred_region
    _
  $region29: #{r2dgru_forward.3} parent=0 // pred_fallthru
    _

// kernel: r2dgru_forward.2
$region0: #{r2dgru_forward.2}
  #allocation0 [shape = 'u32[]', space=smem, size = 0x4, offset = 0x4, fixed_abs, tag = 'smem constant byte address 0x4 - core index']
  #allocation1 [shape = 'u32[144,128]{1,0:T(1,128)}', space=vmem, size = 0x12000, scoped, tag = 'internal scratch']
  #allocation2 [shape = 'f32[8,128]{1,0:T(8,128)}', space=vmem, size = 0x1000, scoped, tag = 'scratch operand']
  %s0 = inlined_call_operand.vmem [shape: f32[8,8,384], index: 0, kind: input, shape index: {}]
  %s1 = inlined_call_operand.vmem [shape: f32[128,384], index: 1, kind: input, shape index: {}]
  %s2 = inlined_call_operand.vmem [shape: f32[1,384], index: 2, kind: input, shape index: {}]
  %s3 = inlined_call_operand.vmem [shape: f32[8,8,128], index: 3, kind: output, shape index: {}]
  %s4 = sld [smem:[#allocation0]]
  $region26: #{r2dgru_forward.2} parent=0
    _
  %s6 = ssub.s32 1, %s4
  %s7 = scalar_select 0, %s6, %s4
  // Predicated region
  $region2: #{r2dgru_forward.2} parent=0 // pred_check
    _
  $region3: #{r2dgru_forward.2} parent=0 // pred_check_branch
    %9 = sbr.rel (0) target = $region5
  $region4: #{r2dgru_forward.2} parent=0 // pred_region
    _
  $region5: #{r2dgru_forward.2} parent=0 // pred_fallthru
    _
  // Predicated region
  $region6: #{r2dgru_forward.2} parent=0 // pred_check
    _
  $region7: #{r2dgru_forward.2} parent=0 // pred_check_branch
    %11 = sbr.rel (0) target = $region9
  $region8: #{r2dgru_forward.2} parent=0 // pred_region
    _
  $region9: #{r2dgru_forward.2} parent=0 // pred_fallthru
    _
  // Predicated region
  $region10: #{r2dgru_forward.2} parent=0 // pred_check
    _
  $region11: #{r2dgru_forward.2} parent=0 // pred_check_branch
    %13 = sbr.rel (0) target = $region13
  $region12: #{r2dgru_forward.2} parent=0 // pred_region
    _
  $region13: #{r2dgru_forward.2} parent=0 // pred_fallthru
    _
  %p14 = scmp.eq.s32.totalorder 0, 0
  // Predicated region
  $region14: #{r2dgru_forward.2} parent=0 // pred_check
    %p15 = pneg %p14
  $region15: #{r2dgru_forward.2} parent=0 // pred_check_branch
    %17 = sbr.rel (%p15) target = $region17
  $region16: #{r2dgru_forward.2} parent=0 // pred_region
    %18 = vst [vmem:[#allocation2] sm:$0xff] 0.0
  $region17: #{r2dgru_forward.2} parent=0 // pred_fallthru
    _
  %v19 = vld [vmem:[%s1] sm:$0xff]
  %v20 = vld [vmem:[%s1 + $0x8] sm:$0xff]
  %v21 = vld [vmem:[%s1 + $0x10] sm:$0xff]
  %v22 = vld [vmem:[%s1 + $0x18] sm:$0xff]
  %v23 = vld [vmem:[%s1 + $0x20] sm:$0xff]
  %v24 = vld [vmem:[%s1 + $0x28] sm:$0xff]
  %v25 = vld [vmem:[%s1 + $0x30] sm:$0xff]
  %v26 = vld [vmem:[%s1 + $0x38] sm:$0xff]
  %v27 = vld [vmem:[%s1 + $0x40] sm:$0xff]
  %v28 = vld [vmem:[%s1 + $0x48] sm:$0xff]
  %v29 = vld [vmem:[%s1 + $0x50] sm:$0xff]
  %v30 = vld [vmem:[%s1 + $0x58] sm:$0xff]
  %v31 = vld [vmem:[%s1 + $0x60] sm:$0xff]
  %v32 = vld [vmem:[%s1 + $0x68] sm:$0xff]
  %v33 = vld [vmem:[%s1 + $0x70] sm:$0xff]
  %v34 = vld [vmem:[%s1 + $0x78] sm:$0xff]
  %v35 = vld [vmem:[%s1 + $0x80] sm:$0xff]
  %v36 = vld [vmem:[%s1 + $0x88] sm:$0xff]
  %v37 = vld [vmem:[%s1 + $0x90] sm:$0xff]
  %v38 = vld [vmem:[%s1 + $0x98] sm:$0xff]
  %v39 = vld [vmem:[%s1 + $0xa0] sm:$0xff]
  %v40 = vld [vmem:[%s1 + $0xa8] sm:$0xff]
  %v41 = vld [vmem:[%s1 + $0xb0] sm:$0xff]
  %v42 = vld [vmem:[%s1 + $0xb8] sm:$0xff]
  %v43 = vld [vmem:[%s1 + $0xc0] sm:$0xff]
  %v44 = vld [vmem:[%s1 + $0xc8] sm:$0xff]
  %v45 = vld [vmem:[%s1 + $0xd0] sm:$0xff]
  %v46 = vld [vmem:[%s1 + $0xd8] sm:$0xff]
  %v47 = vld [vmem:[%s1 + $0xe0] sm:$0xff]
  %v48 = vld [vmem:[%s1 + $0xe8] sm:$0xff]
  %v49 = vld [vmem:[%s1 + $0xf0] sm:$0xff]
  %v50 = vld [vmem:[%s1 + $0xf8] sm:$0xff]
  %v51 = vld [vmem:[%s1 + $0x100] sm:$0xff]
  %v52 = vld [vmem:[%s1 + $0x108] sm:$0xff]
  %v53 = vld [vmem:[%s1 + $0x110] sm:$0xff]
  %v54 = vld [vmem:[%s1 + $0x118] sm:$0xff]
  %v55 = vld [vmem:[%s1 + $0x120] sm:$0xff]
  %v56 = vld [vmem:[%s1 + $0x128] sm:$0xff]
  %v57 = vld [vmem:[%s1 + $0x130] sm:$0xff]
  %v58 = vld [vmem:[%s1 + $0x138] sm:$0xff]
  %v59 = vld [vmem:[%s1 + $0x140] sm:$0xff]
  %v60 = vld [vmem:[%s1 + $0x148] sm:$0xff]
  %v61 = vld [vmem:[%s1 + $0x150] sm:$0xff]
  %v62 = vld [vmem:[%s1 + $0x158] sm:$0xff]
  %v63 = vld [vmem:[%s1 + $0x160] sm:$0xff]
  %v64 = vld [vmem:[%s1 + $0x168] sm:$0xff]
  %v65 = vld [vmem:[%s1 + $0x170] sm:$0xff]
  %v66 = vld [vmem:[%s1 + $0x178] sm:$0xff]
  %v67 = vld [vmem:[%s2] sm:$0x7]
  %v69 = vlaneseq
  %v70 = vshrl.u32 %v69, 7
  %v71 = vsub.s32 0, %v70
  %v72 = vrot.slane %v67, %v71
  %v73 = vlaneseq
  %v74 = vshrl.u32 %v73, 7
  %v75 = vsub.s32 1, %v74
  %v76 = vrot.slane %v67, %v75
  %v77 = vlaneseq
  %v78 = vshrl.u32 %v77, 7
  %v79 = vsub.s32 2, %v78
  %v80 = vrot.slane %v67, %v79
  %v84 = vld [vmem:[#allocation2] sm:$0xff]
  %v85 = vld [vmem:[%s0] sm:$0xff]
  %v86 = vld [vmem:[%s0 + $0x8] sm:$0xff]
  %v87 = vld [vmem:[%s0 + $0x10] sm:$0xff]
  %88 = vmatprep.subr.mxu0 %v20
  %89 = vmatpush1.msra.mxu0 %v19
  %90 = vmatprep.subr.mxu0 %v23
  %91 = vmatpush1.msra.mxu0 %v22
  %92 = vmatprep.subr.mxu0 %v26
  %93 = vmatpush1.msra.mxu0 %v25
  %94 = vmatprep.subr.mxu0 %v29
  %95 = vmatpush1.msra.mxu0 %v28
  %96 = vmatprep.subr.mxu0 %v32
  %97 = vmatpush1.msra.mxu0 %v31
  %98 = vmatprep.subr.mxu0 %v35
  %99 = vmatpush1.msra.mxu0 %v34
  %100 = vmatprep.subr.mxu0 %v38
  %101 = vmatpush1.msra.mxu0 %v37
  %102 = vmatprep.subr.mxu0 %v41
  %103 = vmatpush1.msra.mxu0 %v40
  %104 = vmatprep.subr.mxu0 %v44
  %105 = vmatpush1.msra.mxu0 %v43
  %106 = vmatprep.subr.mxu0 %v47
  %107 = vmatpush1.msra.mxu0 %v46
  %108 = vmatprep.subr.mxu0 %v50
  %109 = vmatpush1.msra.mxu0 %v49
  %110 = vmatprep.subr.mxu0 %v53
  %111 = vmatpush1.msra.mxu0 %v52
  %112 = vmatprep.subr.mxu0 %v56
  %113 = vmatpush1.msra.mxu0 %v55
  %114 = vmatprep.subr.mxu0 %v59
  %115 = vmatpush1.msra.mxu0 %v58
  %116 = vmatprep.subr.mxu0 %v62
  %117 = vmatpush1.msra.mxu0 %v61
  %118 = vmatprep.subr.mxu0 %v65
  %119 = vmatpush1.msra.mxu0 %v64
  %120 = vmatprep.subr.mxu0 0.0
  %121 = vmatpush1.msra.mxu0 0.0
  %122 = vmatprep.subr.mxu0 0.0
  %123 = vmatpush1.msra.mxu0 0.0
  %124 = vmatprep.subr.mxu0 0.0
  %125 = vmatpush1.msra.mxu0 0.0
  %126 = vmatprep.subr.mxu0 0.0
  %127 = vmatpush1.msra.mxu0 0.0
  %128 = vmatprep.subr.mxu0 0.0
  %129 = vmatpush1.msra.mxu0 0.0
  %130 = vmatprep.subr.mxu0 0.0
  %131 = vmatpush1.msra.mxu0 0.0
  %132 = vmatprep.subr.mxu0 0.0
  %133 = vmatpush1.msra.mxu0 0.0
  %134 = vmatprep.subr.mxu0 0.0
  %135 = vmatpush1.msra.mxu0 0.0
  %136 = vmatprep.subr.mxu0 0.0
  %137 = vmatpush1.msra.mxu0 0.0
  %138 = vmatprep.subr.mxu0 0.0
  %139 = vmatpush1.msra.mxu0 0.0
  %140 = vmatprep.subr.mxu0 0.0
  %141 = vmatpush1.msra.mxu0 0.0
  %142 = vmatprep.subr.mxu0 0.0
  %143 = vmatpush1.msra.mxu0 0.0
  %144 = vmatprep.subr.mxu0 0.0
  %145 = vmatpush1.msra.mxu0 0.0
  %146 = vmatprep.subr.mxu0 0.0
  %147 = vmatpush1.msra.mxu0 0.0
  %148 = vmatprep.subr.mxu0 0.0
  %149 = vmatpush1.msra.mxu0 0.0
  %150 = vmatprep.subr.mxu0 0.0
  %151 = vmatpush1.msra.mxu0 0.0
  %152 = vmatprep.mubr.f32.mxu0 0.0
  %153 = vmatmul.mubr.f32.gmra.mrb[0].mxu0 %v84
  %v154 = vpop.f32.mrb[0].mxu0
  %v155 = vadd.f32 %v72, %v154
  %v156 = vpop.f32.mrb[0].mxu0
  %v157 = vadd.f32 %v76, %v156
  %158 = vdwg.mxu0
  %159 = vmatprep.subr.mxu0 0.0
  %160 = vmatpush1.msra.mxu0 %v21
  %161 = vmatprep.subr.mxu0 0.0
  %162 = vmatpush1.msra.mxu0 %v24
  %163 = vmatprep.subr.mxu0 0.0
  %164 = vmatpush1.msra.mxu0 %v27
  %165 = vmatprep.subr.mxu0 0.0
  %166 = vmatpush1.msra.mxu0 %v30
  %167 = vmatprep.subr.mxu0 0.0
  %168 = vmatpush1.msra.mxu0 %v33
  %169 = vmatprep.subr.mxu0 0.0
  %170 = vmatpush1.msra.mxu0 %v36
  %171 = vmatprep.subr.mxu0 0.0
  %172 = vmatpush1.msra.mxu0 %v39
  %173 = vmatprep.subr.mxu0 0.0
  %174 = vmatpush1.msra.mxu0 %v42
  %175 = vmatprep.subr.mxu0 0.0
  %176 = vmatpush1.msra.mxu0 %v45
  %177 = vmatprep.subr.mxu0 0.0
  %178 = vmatpush1.msra.mxu0 %v48
  %179 = vmatprep.subr.mxu0 0.0
  %180 = vmatpush1.msra.mxu0 %v51
  %181 = vmatprep.subr.mxu0 0.0
  %182 = vmatpush1.msra.mxu0 %v54
  %183 = vmatprep.subr.mxu0 0.0
  %184 = vmatpush1.msra.mxu0 %v57
  %185 = vmatprep.subr.mxu0 0.0
  %186 = vmatpush1.msra.mxu0 %v60
  %187 = vmatprep.subr.mxu0 0.0
  %188 = vmatpush1.msra.mxu0 %v63
  %189 = vmatprep.subr.mxu0 0.0
  %190 = vmatpush1.msra.mxu0 %v66
  %191 = vmatprep.subr.mxu0 0.0
  %192 = vmatpush1.msra.mxu0 0.0
  %193 = vmatprep.subr.mxu0 0.0
  %194 = vmatpush1.msra.mxu0 0.0
  %195 = vmatprep.subr.mxu0 0.0
  %196 = vmatpush1.msra.mxu0 0.0
  %197 = vmatprep.subr.mxu0 0.0
  %198 = vmatpush1.msra.mxu0 0.0
  %199 = vmatprep.subr.mxu0 0.0
  %200 = vmatpush1.msra.mxu0 0.0
  %201 = vmatprep.subr.mxu0 0.0
  %202 = vmatpush1.msra.mxu0 0.0
  %203 = vmatprep.subr.mxu0 0.0
  %204 = vmatpush1.msra.mxu0 0.0
  %205 = vmatprep.subr.mxu0 0.0
  %206 = vmatpush1.msra.mxu0 0.0
  %207 = vmatprep.subr.mxu0 0.0
  %208 = vmatpush1.msra.mxu0 0.0
  %209 = vmatprep.subr.mxu0 0.0
  %210 = vmatpush1.msra.mxu0 0.0
  %211 = vmatprep.subr.mxu0 0.0
  %212 = vmatpush1.msra.mxu0 0.0
  %213 = vmatprep.subr.mxu0 0.0
  %214 = vmatpush1.msra.mxu0 0.0
  %215 = vmatprep.subr.mxu0 0.0
  %216 = vmatpush1.msra.mxu0 0.0
  %217 = vmatprep.subr.mxu0 0.0
  %218 = vmatpush1.msra.mxu0 0.0
  %219 = vmatprep.subr.mxu0 0.0
  %220 = vmatpush1.msra.mxu0 0.0
  %221 = vmatprep.subr.mxu0 0.0
  %222 = vmatpush1.msra.mxu0 0.0
  %223 = vmatprep.mubr.f32.mxu0 0.0
  %224 = vmatmul.mubr.f32.gmra.mrb[0].mxu0 %v84
  %v225 = vpop.f32.mrb[0].mxu0
  %v226 = vadd.f32 %v80, %v225
  %v227 = vpop.f32.mrb[0].mxu0
  %228 = vdwg.mxu0
  %v229 = vadd.f32 %v85, %v155
  %v230 = vxor.u32 %v229, 2147483648
  %v231 = vmul.f32 %v230, 1.442695
  %v232 = vpow.pop %v231
  %v233 = vadd.f32 %v232, 1.0
  %v234 = vrcp.pop %v233
  %v235 = vmul.f32 1.0, %v234
  %v236 = vadd.f32 %v86, %v157
  %v237 = vxor.u32 %v236, 2147483648
  %v238 = vmul.f32 %v237, 1.442695
  %v239 = vpow.pop %v238
  %v240 = vadd.f32 %v239, 1.0
  %v241 = vrcp.pop %v240
  %v242 = vmul.f32 1.0, %v241
  %v243 = vmul.f32 %v235, %v226
  %v244 = vadd.f32 %v87, %v243
  %v245 = vtanh.pop %v244
  %v246 = vsub.f32 %v84, %v245
  %v247 = vmul.f32 %v242, %v246
  %v248 = vadd.f32 %v245, %v247
  %249 = vst [vmem:[%s3] sm:$0xff] %v248
  %s250 = scalar_lea.vmem %s0, 24
  %v251 = vld [vmem:[%s250] sm:$0xff]
  %v252 = vld [vmem:[%s250 + $0x8] sm:$0xff]
  %v253 = vld [vmem:[%s250 + $0x10] sm:$0xff]
  %254 = vmatprep.subr.mxu0 %v20
  %255 = vmatpush1.msra.mxu0 %v19
  %256 = vmatprep.subr.mxu0 %v23
  %257 = vmatpush1.msra.mxu0 %v22
  %258 = vmatprep.subr.mxu0 %v26
  %259 = vmatpush1.msra.mxu0 %v25
  %260 = vmatprep.subr.mxu0 %v29
  %261 = vmatpush1.msra.mxu0 %v28
  %262 = vmatprep.subr.mxu0 %v32
  %263 = vmatpush1.msra.mxu0 %v31
  %264 = vmatprep.subr.mxu0 %v35
  %265 = vmatpush1.msra.mxu0 %v34
  %266 = vmatprep.subr.mxu0 %v38
  %267 = vmatpush1.msra.mxu0 %v37
  %268 = vmatprep.subr.mxu0 %v41
  %269 = vmatpush1.msra.mxu0 %v40
  %270 = vmatprep.subr.mxu0 %v44
  %271 = vmatpush1.msra.mxu0 %v43
  %272 = vmatprep.subr.mxu0 %v47
  %273 = vmatpush1.msra.mxu0 %v46
  %274 = vmatprep.subr.mxu0 %v50
  %275 = vmatpush1.msra.mxu0 %v49
  %276 = vmatprep.subr.mxu0 %v53
  %277 = vmatpush1.msra.mxu0 %v52
  %278 = vmatprep.subr.mxu0 %v56
  %279 = vmatpush1.msra.mxu0 %v55
  %280 = vmatprep.subr.mxu0 %v59
  %281 = vmatpush1.msra.mxu0 %v58
  %282 = vmatprep.subr.mxu0 %v62
  %283 = vmatpush1.msra.mxu0 %v61
  %284 = vmatprep.subr.mxu0 %v65
  %285 = vmatpush1.msra.mxu0 %v64
  %286 = vmatprep.subr.mxu0 0.0
  %287 = vmatpush1.msra.mxu0 0.0
  %288 = vmatprep.subr.mxu0 0.0
  %289 = vmatpush1.msra.mxu0 0.0
  %290 = vmatprep.subr.mxu0 0.0
  %291 = vmatpush1.msra.mxu0 0.0
  %292 = vmatprep.subr.mxu0 0.0
  %293 = vmatpush1.msra.mxu0 0.0
  %294 = vmatprep.subr.mxu0 0.0
  %295 = vmatpush1.msra.mxu0 0.0
  %296 = vmatprep.subr.mxu0 0.0
  %297 = vmatpush1.msra.mxu0 0.0
  %298 = vmatprep.subr.mxu0 0.0
  %299 = vmatpush1.msra.mxu0 0.0
  %300 = vmatprep.subr.mxu0 0.0
  %301 = vmatpush1.msra.mxu0 0.0
  %302 = vmatprep.subr.mxu0 0.0
  %303 = vmatpush1.msra.mxu0 0.0
  %304 = vmatprep.subr.mxu0 0.0
  %305 = vmatpush1.msra.mxu0 0.0
  %306 = vmatprep.subr.mxu0 0.0
  %307 = vmatpush1.msra.mxu0 0.0
  %308 = vmatprep.subr.mxu0 0.0
  %309 = vmatpush1.msra.mxu0 0.0
  %310 = vmatprep.subr.mxu0 0.0
  %311 = vmatpush1.msra.mxu0 0.0
  %312 = vmatprep.subr.mxu0 0.0
  %313 = vmatpush1.msra.mxu0 0.0
  %314 = vmatprep.subr.mxu0 0.0
  %315 = vmatpush1.msra.mxu0 0.0
  %316 = vmatprep.subr.mxu0 0.0
  %317 = vmatpush1.msra.mxu0 0.0
  %318 = vmatprep.mubr.f32.mxu0 0.0
  %319 = vmatmul.mubr.f32.gmra.mrb[0].mxu0 %v248
  %v320 = vpop.f32.mrb[0].mxu0
  %v321 = vadd.f32 %v72, %v320
  %v322 = vpop.f32.mrb[0].mxu0
  %v323 = vadd.f32 %v76, %v322
  %324 = vdwg.mxu0
  %325 = vmatprep.subr.mxu0 0.0
  %326 = vmatpush1.msra.mxu0 %v21
  %327 = vmatprep.subr.mxu0 0.0
  %328 = vmatpush1.msra.mxu0 %v24
  %329 = vmatprep.subr.mxu0 0.0
  %330 = vmatpush1.msra.mxu0 %v27
  %331 = vmatprep.subr.mxu0 0.0
  %332 = vmatpush1.msra.mxu0 %v30
  %333 = vmatprep.subr.mxu0 0.0
  %334 = vmatpush1.msra.mxu0 %v33
  %335 = vmatprep.subr.mxu0 0.0
  %336 = vmatpush1.msra.mxu0 %v36
  %337 = vmatprep.subr.mxu0 0.0
  %338 = vmatpush1.msra.mxu0 %v39
  %339 = vmatprep.subr.mxu0 0.0
  %340 = vmatpush1.msra.mxu0 %v42
  %341 = vmatprep.subr.mxu0 0.0
  %342 = vmatpush1.msra.mxu0 %v45
  %343 = vmatprep.subr.mxu0 0.0
  %344 = vmatpush1.msra.mxu0 %v48
  %345 = vmatprep.subr.mxu0 0.0
  %346 = vmatpush1.msra.mxu0 %v51
  %347 = vmatprep.subr.mxu0 0.0
  %348 = vmatpush1.msra.mxu0 %v54
  %349 = vmatprep.subr.mxu0 0.0
  %350 = vmatpush1.msra.mxu0 %v57
  %351 = vmatprep.subr.mxu0 0.0
  %352 = vmatpush1.msra.mxu0 %v60
  %353 = vmatprep.subr.mxu0 0.0
  %354 = vmatpush1.msra.mxu0 %v63
  %355 = vmatprep.subr.mxu0 0.0
  %356 = vmatpush1.msra.mxu0 %v66
  %357 = vmatprep.subr.mxu0 0.0
  %358 = vmatpush1.msra.mxu0 0.0
  %359 = vmatprep.subr.mxu0 0.0
  %360 = vmatpush1.msra.mxu0 0.0
  %361 = vmatprep.subr.mxu0 0.0
  %362 = vmatpush1.msra.mxu0 0.0
  %363 = vmatprep.subr.mxu0 0.0
  %364 = vmatpush1.msra.mxu0 0.0
  %365 = vmatprep.subr.mxu0 0.0
  %366 = vmatpush1.msra.mxu0 0.0
  %367 = vmatprep.subr.mxu0 0.0
  %368 = vmatpush1.msra.mxu0 0.0
  %369 = vmatprep.subr.mxu0 0.0
  %370 = vmatpush1.msra.mxu0 0.0
  %371 = vmatprep.subr.mxu0 0.0
  %372 = vmatpush1.msra.mxu0 0.0
  %373 = vmatprep.subr.mxu0 0.0
  %374 = vmatpush1.msra.mxu0 0.0
  %375 = vmatprep.subr.mxu0 0.0
  %376 = vmatpush1.msra.mxu0 0.0
  %377 = vmatprep.subr.mxu0 0.0
  %378 = vmatpush1.msra.mxu0 0.0
  %379 = vmatprep.subr.mxu0 0.0
  %380 = vmatpush1.msra.mxu0 0.0
  %381 = vmatprep.subr.mxu0 0.0
  %382 = vmatpush1.msra.mxu0 0.0
  %383 = vmatprep.subr.mxu0 0.0
  %384 = vmatpush1.msra.mxu0 0.0
  %385 = vmatprep.subr.mxu0 0.0
  %386 = vmatpush1.msra.mxu0 0.0
  %387 = vmatprep.subr.mxu0 0.0
  %388 = vmatpush1.msra.mxu0 0.0
  %389 = vmatprep.mubr.f32.mxu0 0.0
  %390 = vmatmul.mubr.f32.gmra.mrb[0].mxu0 %v248
  %v391 = vpop.f32.mrb[0].mxu0
  %v392 = vadd.f32 %v80, %v391
  %v393 = vpop.f32.mrb[0].mxu0
  %394 = vdwg.mxu0
  %v395 = vadd.f32 %v251, %v321
  %v396 = vxor.u32 %v395, 2147483648
  %v397 = vmul.f32 %v396, 1.442695
  %v398 = vpow.pop %v397
  %v399 = vadd.f32 %v398, 1.0
  %v400 = vrcp.pop %v399
  %v401 = vmul.f32 1.0, %v400
  %v402 = vadd.f32 %v252, %v323
  %v403 = vxor.u32 %v402, 2147483648
  %v404 = vmul.f32 %v403, 1.442695
  %v405 = vpow.pop %v404
  %v406 = vadd.f32 %v405, 1.0
  %v407 = vrcp.pop %v406
  %v408 = vmul.f32 1.0, %v407
  %v409 = vmul.f32 %v401, %v392
  %v410 = vadd.f32 %v253, %v409
  %v411 = vtanh.pop %v410
  %v412 = vsub.f32 %v248, %v411
  %v413 = vmul.f32 %v408, %v412
  %v414 = vadd.f32 %v411, %v413
  %s415 = scalar_lea.vmem %s3, 8
  %416 = vst [vmem:[%s415] sm:$0xff] %v414
  %s417 = scalar_lea.vmem %s0, 48
  %v418 = vld [vmem:[%s417] sm:$0xff]
  %v419 = vld [vmem:[%s417 + $0x8] sm:$0xff]
  %v420 = vld [vmem:[%s417 + $0x10] sm:$0xff]
  %421 = vmatprep.subr.mxu0 %v20
  %422 = vmatpush1.msra.mxu0 %v19
  %423 = vmatprep.subr.mxu0 %v23
  %424 = vmatpush1.msra.mxu0 %v22
  %425 = vmatprep.subr.mxu0 %v26
  %426 = vmatpush1.msra.mxu0 %v25
  %427 = vmatprep.subr.mxu0 %v29
  %428 = vmatpush1.msra.mxu0 %v28
  %429 = vmatprep.subr.mxu0 %v32
  %430 = vmatpush1.msra.mxu0 %v31
  %431 = vmatprep.subr.mxu0 %v35
  %432 = vmatpush1.msra.mxu0 %v34
  %433 = vmatprep.subr.mxu0 %v38
  %434 = vmatpush1.msra.mxu0 %v37
  %435 = vmatprep.subr.mxu0 %v41
  %436 = vmatpush1.msra.mxu0 %v40
  %437 = vmatprep.subr.mxu0 %v44
  %438 = vmatpush1.msra.mxu0 %v43
  %439 = vmatprep.subr.mxu0 %v47
  %440 = vmatpush1.msra.mxu0 %v46
  %441 = vmatprep.subr.mxu0 %v50
  %442 = vmatpush1.msra.mxu0 %v49
  %443 = vmatprep.subr.mxu0 %v53
  %444 = vmatpush1.msra.mxu0 %v52
  %445 = vmatprep.subr.mxu0 %v56
  %446 = vmatpush1.msra.mxu0 %v55
  %447 = vmatprep.subr.mxu0 %v59
  %448 = vmatpush1.msra.mxu0 %v58
  %449 = vmatprep.subr.mxu0 %v62
  %450 = vmatpush1.msra.mxu0 %v61
  %451 = vmatprep.subr.mxu0 %v65
  %452 = vmatpush1.msra.mxu0 %v64
  %453 = vmatprep.subr.mxu0 0.0
  %454 = vmatpush1.msra.mxu0 0.0
  %455 = vmatprep.subr.mxu0 0.0
  %456 = vmatpush1.msra.mxu0 0.0
  %457 = vmatprep.subr.mxu0 0.0
  %458 = vmatpush1.msra.mxu0 0.0
  %459 = vmatprep.subr.mxu0 0.0
  %460 = vmatpush1.msra.mxu0 0.0
  %461 = vmatprep.subr.mxu0 0.0
  %462 = vmatpush1.msra.mxu0 0.0
  %463 = vmatprep.subr.mxu0 0.0
  %464 = vmatpush1.msra.mxu0 0.0
  %465 = vmatprep.subr.mxu0 0.0
  %466 = vmatpush1.msra.mxu0 0.0
  %467 = vmatprep.subr.mxu0 0.0
  %468 = vmatpush1.msra.mxu0 0.0
  %469 = vmatprep.subr.mxu0 0.0
  %470 = vmatpush1.msra.mxu0 0.0
  %471 = vmatprep.subr.mxu0 0.0
  %472 = vmatpush1.msra.mxu0 0.0
  %473 = vmatprep.subr.mxu0 0.0
  %474 = vmatpush1.msra.mxu0 0.0
  %475 = vmatprep.subr.mxu0 0.0
  %476 = vmatpush1.msra.mxu0 0.0
  %477 = vmatprep.subr.mxu0 0.0
  %478 = vmatpush1.msra.mxu0 0.0
  %479 = vmatprep.subr.mxu0 0.0
  %480 = vmatpush1.msra.mxu0 0.0
  %481 = vmatprep.subr.mxu0 0.0
  %482 = vmatpush1.msra.mxu0 0.0
  %483 = vmatprep.subr.mxu0 0.0
  %484 = vmatpush1.msra.mxu0 0.0
  %485 = vmatprep.mubr.f32.mxu0 0.0
  %486 = vmatmul.mubr.f32.gmra.mrb[0].mxu0 %v414
  %v487 = vpop.f32.mrb[0].mxu0
  %v488 = vadd.f32 %v72, %v487
  %v489 = vpop.f32.mrb[0].mxu0
  %v490 = vadd.f32 %v76, %v489
  %491 = vdwg.mxu0
  %492 = vmatprep.subr.mxu0 0.0
  %493 = vmatpush1.msra.mxu0 %v21
  %494 = vmatprep.subr.mxu0 0.0
  %495 = vmatpush1.msra.mxu0 %v24
  %496 = vmatprep.subr.mxu0 0.0
  %497 = vmatpush1.msra.mxu0 %v27
  %498 = vmatprep.subr.mxu0 0.0
  %499 = vmatpush1.msra.mxu0 %v30
  %500 = vmatprep.subr.mxu0 0.0
  %501 = vmatpush1.msra.mxu0 %v33
  %502 = vmatprep.subr.mxu0 0.0
  %503 = vmatpush1.msra.mxu0 %v36
  %504 = vmatprep.subr.mxu0 0.0
  %505 = vmatpush1.msra.mxu0 %v39
  %506 = vmatprep.subr.mxu0 0.0
  %507 = vmatpush1.msra.mxu0 %v42
  %508 = vmatprep.subr.mxu0 0.0
  %509 = vmatpush1.msra.mxu0 %v45
  %510 = vmatprep.subr.mxu0 0.0
  %511 = vmatpush1.msra.mxu0 %v48
  %512 = vmatprep.subr.mxu0 0.0
  %513 = vmatpush1.msra.mxu0 %v51
  %514 = vmatprep.subr.mxu0 0.0
  %515 = vmatpush1.msra.mxu0 %v54
  %516 = vmatprep.subr.mxu0 0.0
  %517 = vmatpush1.msra.mxu0 %v57
  %518 = vmatprep.subr.mxu0 0.0
  %519 = vmatpush1.msra.mxu0 %v60
  %520 = vmatprep.subr.mxu0 0.0
  %521 = vmatpush1.msra.mxu0 %v63
  %522 = vmatprep.subr.mxu0 0.0
  %523 = vmatpush1.msra.mxu0 %v66
  %524 = vmatprep.subr.mxu0 0.0
  %525 = vmatpush1.msra.mxu0 0.0
  %526 = vmatprep.subr.mxu0 0.0
  %527 = vmatpush1.msra.mxu0 0.0
  %528 = vmatprep.subr.mxu0 0.0
  %529 = vmatpush1.msra.mxu0 0.0
  %530 = vmatprep.subr.mxu0 0.0
  %531 = vmatpush1.msra.mxu0 0.0
  %532 = vmatprep.subr.mxu0 0.0
  %533 = vmatpush1.msra.mxu0 0.0
  %534 = vmatprep.subr.mxu0 0.0
  %535 = vmatpush1.msra.mxu0 0.0
  %536 = vmatprep.subr.mxu0 0.0
  %537 = vmatpush1.msra.mxu0 0.0
  %538 = vmatprep.subr.mxu0 0.0
  %539 = vmatpush1.msra.mxu0 0.0
  %540 = vmatprep.subr.mxu0 0.0
  %541 = vmatpush1.msra.mxu0 0.0
  %542 = vmatprep.subr.mxu0 0.0
  %543 = vmatpush1.msra.mxu0 0.0
  %544 = vmatprep.subr.mxu0 0.0
  %545 = vmatpush1.msra.mxu0 0.0
  %546 = vmatprep.subr.mxu0 0.0
  %547 = vmatpush1.msra.mxu0 0.0
  %548 = vmatprep.subr.mxu0 0.0
  %549 = vmatpush1.msra.mxu0 0.0
  %550 = vmatprep.subr.mxu0 0.0
  %551 = vmatpush1.msra.mxu0 0.0
  %552 = vmatprep.subr.mxu0 0.0
  %553 = vmatpush1.msra.mxu0 0.0
  %554 = vmatprep.subr.mxu0 0.0
  %555 = vmatpush1.msra.mxu0 0.0
  %556 = vmatprep.mubr.f32.mxu0 0.0
  %557 = vmatmul.mubr.f32.gmra.mrb[0].mxu0 %v414
  %v558 = vpop.f32.mrb[0].mxu0
  %v559 = vadd.f32 %v80, %v558
  %v560 = vpop.f32.mrb[0].mxu0
  %561 = vdwg.mxu0
  %v562 = vadd.f32 %v418, %v488
  %v563 = vxor.u32 %v562, 2147483648
  %v564 = vmul.f32 %v563, 1.442695
  %v565 = vpow.pop %v564
  %v566 = vadd.f32 %v565, 1.0
  %v567 = vrcp.pop %v566
  %v568 = vmul.f32 1.0, %v567
  %v569 = vadd.f32 %v419, %v490
  %v570 = vxor.u32 %v569, 2147483648
  %v571 = vmul.f32 %v570, 1.442695
  %v572 = vpow.pop %v571
  %v573 = vadd.f32 %v572, 1.0
  %v574 = vrcp.pop %v573
  %v575 = vmul.f32 1.0, %v574
  %v576 = vmul.f32 %v568, %v559
  %v577 = vadd.f32 %v420, %v576
  %v578 = vtanh.pop %v577
  %v579 = vsub.f32 %v414, %v578
  %v580 = vmul.f32 %v575, %v579
  %v581 = vadd.f32 %v578, %v580
  %s582 = scalar_lea.vmem %s3, 16
  %583 = vst [vmem:[%s582] sm:$0xff] %v581
  %s584 = scalar_lea.vmem %s0, 72
  %v585 = vld [vmem:[%s584] sm:$0xff]
  %v586 = vld [vmem:[%s584 + $0x8] sm:$0xff]
  %v587 = vld [vmem:[%s584 + $0x10] sm:$0xff]
  %588 = vmatprep.subr.mxu0 %v20
  %589 = vmatpush1.msra.mxu0 %v19
  %590 = vmatprep.subr.mxu0 %v23
  %591 = vmatpush1.msra.mxu0 %v22
  %592 = vmatprep.subr.mxu0 %v26
  %593 = vmatpush1.msra.mxu0 %v25
  %594 = vmatprep.subr.mxu0 %v29
  %595 = vmatpush1.msra.mxu0 %v28
  %596 = vmatprep.subr.mxu0 %v32
  %597 = vmatpush1.msra.mxu0 %v31
  %598 = vmatprep.subr.mxu0 %v35
  %599 = vmatpush1.msra.mxu0 %v34
  %600 = vmatprep.subr.mxu0 %v38
  %601 = vmatpush1.msra.mxu0 %v37
  %602 = vmatprep.subr.mxu0 %v41
  %603 = vmatpush1.msra.mxu0 %v40
  %604 = vmatprep.subr.mxu0 %v44
  %605 = vmatpush1.msra.mxu0 %v43
  %606 = vmatprep.subr.mxu0 %v47
  %607 = vmatpush1.msra.mxu0 %v46
  %608 = vmatprep.subr.mxu0 %v50
  %609 = vmatpush1.msra.mxu0 %v49
  %610 = vmatprep.subr.mxu0 %v53
  %611 = vmatpush1.msra.mxu0 %v52
  %612 = vmatprep.subr.mxu0 %v56
  %613 = vmatpush1.msra.mxu0 %v55
  %614 = vmatprep.subr.mxu0 %v59
  %615 = vmatpush1.msra.mxu0 %v58
  %616 = vmatprep.subr.mxu0 %v62
  %617 = vmatpush1.msra.mxu0 %v61
  %618 = vmatprep.subr.mxu0 %v65
  %619 = vmatpush1.msra.mxu0 %v64
  %620 = vmatprep.subr.mxu0 0.0
  %621 = vmatpush1.msra.mxu0 0.0
  %622 = vmatprep.subr.mxu0 0.0
  %623 = vmatpush1.msra.mxu0 0.0
  %624 = vmatprep.subr.mxu0 0.0
  %625 = vmatpush1.msra.mxu0 0.0
  %626 = vmatprep.subr.mxu0 0.0
  %627 = vmatpush1.msra.mxu0 0.0
  %628 = vmatprep.subr.mxu0 0.0
  %629 = vmatpush1.msra.mxu0 0.0
  %630 = vmatprep.subr.mxu0 0.0
  %631 = vmatpush1.msra.mxu0 0.0
  %632 = vmatprep.subr.mxu0 0.0
  %633 = vmatpush1.msra.mxu0 0.0
  %634 = vmatprep.subr.mxu0 0.0
  %635 = vmatpush1.msra.mxu0 0.0
  %636 = vmatprep.subr.mxu0 0.0
  %637 = vmatpush1.msra.mxu0 0.0
  %638 = vmatprep.subr.mxu0 0.0
  %639 = vmatpush1.msra.mxu0 0.0
  %640 = vmatprep.subr.mxu0 0.0
  %641 = vmatpush1.msra.mxu0 0.0
  %642 = vmatprep.subr.mxu0 0.0
  %643 = vmatpush1.msra.mxu0 0.0
  %644 = vmatprep.subr.mxu0 0.0
  %645 = vmatpush1.msra.mxu0 0.0
  %646 = vmatprep.subr.mxu0 0.0
  %647 = vmatpush1.msra.mxu0 0.0
  %648 = vmatprep.subr.mxu0 0.0
  %649 = vmatpush1.msra.mxu0 0.0
  %650 = vmatprep.subr.mxu0 0.0
  %651 = vmatpush1.msra.mxu0 0.0
  %652 = vmatprep.mubr.f32.mxu0 0.0
  %653 = vmatmul.mubr.f32.gmra.mrb[0].mxu0 %v581
  %v654 = vpop.f32.mrb[0].mxu0
  %v655 = vadd.f32 %v72, %v654
  %v656 = vpop.f32.mrb[0].mxu0
  %v657 = vadd.f32 %v76, %v656
  %658 = vdwg.mxu0
  %659 = vmatprep.subr.mxu0 0.0
  %660 = vmatpush1.msra.mxu0 %v21
  %661 = vmatprep.subr.mxu0 0.0
  %662 = vmatpush1.msra.mxu0 %v24
  %663 = vmatprep.subr.mxu0 0.0
  %664 = vmatpush1.msra.mxu0 %v27
  %665 = vmatprep.subr.mxu0 0.0
  %666 = vmatpush1.msra.mxu0 %v30
  %667 = vmatprep.subr.mxu0 0.0
  %668 = vmatpush1.msra.mxu0 %v33
  %669 = vmatprep.subr.mxu0 0.0
  %670 = vmatpush1.msra.mxu0 %v36
  %671 = vmatprep.subr.mxu0 0.0
  %672 = vmatpush1.msra.mxu0 %v39
  %673 = vmatprep.subr.mxu0 0.0
  %674 = vmatpush1.msra.mxu0 %v42
  %675 = vmatprep.subr.mxu0 0.0
  %676 = vmatpush1.msra.mxu0 %v45
  %677 = vmatprep.subr.mxu0 0.0
  %678 = vmatpush1.msra.mxu0 %v48
  %679 = vmatprep.subr.mxu0 0.0
  %680 = vmatpush1.msra.mxu0 %v51
  %681 = vmatprep.subr.mxu0 0.0
  %682 = vmatpush1.msra.mxu0 %v54
  %683 = vmatprep.subr.mxu0 0.0
  %684 = vmatpush1.msra.mxu0 %v57
  %685 = vmatprep.subr.mxu0 0.0
  %686 = vmatpush1.msra.mxu0 %v60
  %687 = vmatprep.subr.mxu0 0.0
  %688 = vmatpush1.msra.mxu0 %v63
  %689 = vmatprep.subr.mxu0 0.0
  %690 = vmatpush1.msra.mxu0 %v66
  %691 = vmatprep.subr.mxu0 0.0
  %692 = vmatpush1.msra.mxu0 0.0
  %693 = vmatprep.subr.mxu0 0.0
  %694 = vmatpush1.msra.mxu0 0.0
  %695 = vmatprep.subr.mxu0 0.0
  %696 = vmatpush1.msra.mxu0 0.0
  %697 = vmatprep.subr.mxu0 0.0
  %698 = vmatpush1.msra.mxu0 0.0
  %699 = vmatprep.subr.mxu0 0.0
  %700 = vmatpush1.msra.mxu0 0.0
  %701 = vmatprep.subr.mxu0 0.0
  %702 = vmatpush1.msra.mxu0 0.0
  %703 = vmatprep.subr.mxu0 0.0
  %704 = vmatpush1.msra.mxu0 0.0
  %705 = vmatprep.subr.mxu0 0.0
  %706 = vmatpush1.msra.mxu0 0.0
  %707 = vmatprep.subr.mxu0 0.0
  %708 = vmatpush1.msra.mxu0 0.0
  %709 = vmatprep.subr.mxu0 0.0
  %710 = vmatpush1.msra.mxu0 0.0
  %711 = vmatprep.subr.mxu0 0.0
  %712 = vmatpush1.msra.mxu0 0.0
  %713 = vmatprep.subr.mxu0 0.0
  %714 = vmatpush1.msra.mxu0 0.0
  %715 = vmatprep.subr.mxu0 0.0
  %716 = vmatpush1.msra.mxu0 0.0
  %717 = vmatprep.subr.mxu0 0.0
  %718 = vmatpush1.msra.mxu0 0.0
  %719 = vmatprep.subr.mxu0 0.0
  %720 = vmatpush1.msra.mxu0 0.0
  %721 = vmatprep.subr.mxu0 0.0
  %722 = vmatpush1.msra.mxu0 0.0
  %723 = vmatprep.mubr.f32.mxu0 0.0
  %724 = vmatmul.mubr.f32.gmra.mrb[0].mxu0 %v581
  %v725 = vpop.f32.mrb[0].mxu0
  %v726 = vadd.f32 %v80, %v725
  %v727 = vpop.f32.mrb[0].mxu0
  %728 = vdwg.mxu0
  %v729 = vadd.f32 %v585, %v655
  %v730 = vxor.u32 %v729, 2147483648
  %v731 = vmul.f32 %v730, 1.442695
  %v732 = vpow.pop %v731
  %v733 = vadd.f32 %v732, 1.0
  %v734 = vrcp.pop %v733
  %v735 = vmul.f32 1.0, %v734
  %v736 = vadd.f32 %v586, %v657
  %v737 = vxor.u32 %v736, 2147483648
  %v738 = vmul.f32 %v737, 1.442695
  %v739 = vpow.pop %v738
  %v740 = vadd.f32 %v739, 1.0
  %v741 = vrcp.pop %v740
  %v742 = vmul.f32 1.0, %v741
  %v743 = vmul.f32 %v735, %v726
  %v744 = vadd.f32 %v587, %v743
  %v745 = vtanh.pop %v744
  %v746 = vsub.f32 %v581, %v745
  %v747 = vmul.f32 %v742, %v746
  %v748 = vadd.f32 %v745, %v747
  %s749 = scalar_lea.vmem %s3, 24
  %750 = vst [vmem:[%s749] sm:$0xff] %v748
  %s751 = scalar_lea.vmem %s0, 96
  %v752 = vld [vmem:[%s751] sm:$0xff]
  %v753 = vld [vmem:[%s751 + $0x8] sm:$0xff]
  %v754 = vld [vmem:[%s751 + $0x10] sm:$0xff]
  %755 = vmatprep.subr.mxu0 %v20
  %756 = vmatpush1.msra.mxu0 %v19
  %757 = vmatprep.subr.mxu0 %v23
  %758 = vmatpush1.msra.mxu0 %v22
  %759 = vmatprep.subr.mxu0 %v26
  %760 = vmatpush1.msra.mxu0 %v25
  %761 = vmatprep.subr.mxu0 %v29
  %762 = vmatpush1.msra.mxu0 %v28
  %763 = vmatprep.subr.mxu0 %v32
  %764 = vmatpush1.msra.mxu0 %v31
  %765 = vmatprep.subr.mxu0 %v35
  %766 = vmatpush1.msra.mxu0 %v34
  %767 = vmatprep.subr.mxu0 %v38
  %768 = vmatpush1.msra.mxu0 %v37
  %769 = vmatprep.subr.mxu0 %v41
  %770 = vmatpush1.msra.mxu0 %v40
  %771 = vmatprep.subr.mxu0 %v44
  %772 = vmatpush1.msra.mxu0 %v43
  %773 = vmatprep.subr.mxu0 %v47
  %774 = vmatpush1.msra.mxu0 %v46
  %775 = vmatprep.subr.mxu0 %v50
  %776 = vmatpush1.msra.mxu0 %v49
  %777 = vmatprep.subr.mxu0 %v53
  %778 = vmatpush1.msra.mxu0 %v52
  %779 = vmatprep.subr.mxu0 %v56
  %780 = vmatpush1.msra.mxu0 %v55
  %781 = vmatprep.subr.mxu0 %v59
  %782 = vmatpush1.msra.mxu0 %v58
  %783 = vmatprep.subr.mxu0 %v62
  %784 = vmatpush1.msra.mxu0 %v61
  %785 = vmatprep.subr.mxu0 %v65
  %786 = vmatpush1.msra.mxu0 %v64
  %787 = vmatprep.subr.mxu0 0.0
  %788 = vmatpush1.msra.mxu0 0.0
  %789 = vmatprep.subr.mxu0 0.0
  %790 = vmatpush1.msra.mxu0 0.0
  %791 = vmatprep.subr.mxu0 0.0
  %792 = vmatpush1.msra.mxu0 0.0
  %793 = vmatprep.subr.mxu0 0.0
  %794 = vmatpush1.msra.mxu0 0.0
  %795 = vmatprep.subr.mxu0 0.0
  %796 = vmatpush1.msra.mxu0 0.0
  %797 = vmatprep.subr.mxu0 0.0
  %798 = vmatpush1.msra.mxu0 0.0
  %799 = vmatprep.subr.mxu0 0.0
  %800 = vmatpush1.msra.mxu0 0.0
  %801 = vmatprep.subr.mxu0 0.0
  %802 = vmatpush1.msra.mxu0 0.0
  %803 = vmatprep.subr.mxu0 0.0
  %804 = vmatpush1.msra.mxu0 0.0
  %805 = vmatprep.subr.mxu0 0.0
  %806 = vmatpush1.msra.mxu0 0.0
  %807 = vmatprep.subr.mxu0 0.0
  %808 = vmatpush1.msra.mxu0 0.0
  %809 = vmatprep.subr.mxu0 0.0
  %810 = vmatpush1.msra.mxu0 0.0
  %811 = vmatprep.subr.mxu0 0.0
  %812 = vmatpush1.msra.mxu0 0.0
  %813 = vmatprep.subr.mxu0 0.0
  %814 = vmatpush1.msra.mxu0 0.0
  %815 = vmatprep.subr.mxu0 0.0
  %816 = vmatpush1.msra.mxu0 0.0
  %817 = vmatprep.subr.mxu0 0.0
  %818 = vmatpush1.msra.mxu0 0.0
  %819 = vmatprep.mubr.f32.mxu0 0.0
  %820 = vmatmul.mubr.f32.gmra.mrb[0].mxu0 %v748
  %v821 = vpop.f32.mrb[0].mxu0
  %v822 = vadd.f32 %v72, %v821
  %v823 = vpop.f32.mrb[0].mxu0
  %v824 = vadd.f32 %v76, %v823
  %825 = vdwg.mxu0
  %826 = vmatprep.subr.mxu0 0.0
  %827 = vmatpush1.msra.mxu0 %v21
  %828 = vmatprep.subr.mxu0 0.0
  %829 = vmatpush1.msra.mxu0 %v24
  %830 = vmatprep.subr.mxu0 0.0
  %831 = vmatpush1.msra.mxu0 %v27
  %832 = vmatprep.subr.mxu0 0.0
  %833 = vmatpush1.msra.mxu0 %v30
  %834 = vmatprep.subr.mxu0 0.0
  %835 = vmatpush1.msra.mxu0 %v33
  %836 = vmatprep.subr.mxu0 0.0
  %837 = vmatpush1.msra.mxu0 %v36
  %838 = vmatprep.subr.mxu0 0.0
  %839 = vmatpush1.msra.mxu0 %v39
  %840 = vmatprep.subr.mxu0 0.0
  %841 = vmatpush1.msra.mxu0 %v42
  %842 = vmatprep.subr.mxu0 0.0
  %843 = vmatpush1.msra.mxu0 %v45
  %844 = vmatprep.subr.mxu0 0.0
  %845 = vmatpush1.msra.mxu0 %v48
  %846 = vmatprep.subr.mxu0 0.0
  %847 = vmatpush1.msra.mxu0 %v51
  %848 = vmatprep.subr.mxu0 0.0
  %849 = vmatpush1.msra.mxu0 %v54
  %850 = vmatprep.subr.mxu0 0.0
  %851 = vmatpush1.msra.mxu0 %v57
  %852 = vmatprep.subr.mxu0 0.0
  %853 = vmatpush1.msra.mxu0 %v60
  %854 = vmatprep.subr.mxu0 0.0
  %855 = vmatpush1.msra.mxu0 %v63
  %856 = vmatprep.subr.mxu0 0.0
  %857 = vmatpush1.msra.mxu0 %v66
  %858 = vmatprep.subr.mxu0 0.0
  %859 = vmatpush1.msra.mxu0 0.0
  %860 = vmatprep.subr.mxu0 0.0
  %861 = vmatpush1.msra.mxu0 0.0
  %862 = vmatprep.subr.mxu0 0.0
  %863 = vmatpush1.msra.mxu0 0.0
  %864 = vmatprep.subr.mxu0 0.0
  %865 = vmatpush1.msra.mxu0 0.0
  %866 = vmatprep.subr.mxu0 0.0
  %867 = vmatpush1.msra.mxu0 0.0
  %868 = vmatprep.subr.mxu0 0.0
  %869 = vmatpush1.msra.mxu0 0.0
  %870 = vmatprep.subr.mxu0 0.0
  %871 = vmatpush1.msra.mxu0 0.0
  %872 = vmatprep.subr.mxu0 0.0
  %873 = vmatpush1.msra.mxu0 0.0
  %874 = vmatprep.subr.mxu0 0.0
  %875 = vmatpush1.msra.mxu0 0.0
  %876 = vmatprep.subr.mxu0 0.0
  %877 = vmatpush1.msra.mxu0 0.0
  %878 = vmatprep.subr.mxu0 0.0
  %879 = vmatpush1.msra.mxu0 0.0
  %880 = vmatprep.subr.mxu0 0.0
  %881 = vmatpush1.msra.mxu0 0.0
  %882 = vmatprep.subr.mxu0 0.0
  %883 = vmatpush1.msra.mxu0 0.0
  %884 = vmatprep.subr.mxu0 0.0
  %885 = vmatpush1.msra.mxu0 0.0
  %886 = vmatprep.subr.mxu0 0.0
  %887 = vmatpush1.msra.mxu0 0.0
  %888 = vmatprep.subr.mxu0 0.0
  %889 = vmatpush1.msra.mxu0 0.0
  %890 = vmatprep.mubr.f32.mxu0 0.0
  %891 = vmatmul.mubr.f32.gmra.mrb[0].mxu0 %v748
  %v892 = vpop.f32.mrb[0].mxu0
  %v893 = vadd.f32 %v80, %v892
  %v894 = vpop.f32.mrb[0].mxu0
  %895 = vdwg.mxu0
  %v896 = vadd.f32 %v752, %v822
  %v897 = vxor.u32 %v896, 2147483648
  %v898 = vmul.f32 %v897, 1.442695
  %v899 = vpow.pop %v898
  %v900 = vadd.f32 %v899, 1.0
  %v901 = vrcp.pop %v900
  %v902 = vmul.f32 1.0, %v901
  %v903 = vadd.f32 %v753, %v824
  %v904 = vxor.u32 %v903, 2147483648
  %v905 = vmul.f32 %v904, 1.442695
  %v906 = vpow.pop %v905
  %v907 = vadd.f32 %v906, 1.0
  %v908 = vrcp.pop %v907
  %v909 = vmul.f32 1.0, %v908
  %v910 = vmul.f32 %v902, %v893
  %v911 = vadd.f32 %v754, %v910
  %v912 = vtanh.pop %v911
  %v913 = vsub.f32 %v748, %v912
  %v914 = vmul.f32 %v909, %v913
  %v915 = vadd.f32 %v912, %v914
  %s916 = scalar_lea.vmem %s3, 32
  %917 = vst [vmem:[%s916] sm:$0xff] %v915
  %s918 = scalar_lea.vmem %s0, 120
  %v919 = vld [vmem:[%s918] sm:$0xff]
  %v920 = vld [vmem:[%s918 + $0x8] sm:$0xff]
  %v921 = vld [vmem:[%s918 + $0x10] sm:$0xff]
  %922 = vmatprep.subr.mxu0 %v20
  %923 = vmatpush1.msra.mxu0 %v19
  %924 = vmatprep.subr.mxu0 %v23
  %925 = vmatpush1.msra.mxu0 %v22
  %926 = vmatprep.subr.mxu0 %v26
  %927 = vmatpush1.msra.mxu0 %v25
  %928 = vmatprep.subr.mxu0 %v29
  %929 = vmatpush1.msra.mxu0 %v28
  %930 = vmatprep.subr.mxu0 %v32
  %931 = vmatpush1.msra.mxu0 %v31
  %932 = vmatprep.subr.mxu0 %v35
  %933 = vmatpush1.msra.mxu0 %v34
  %934 = vmatprep.subr.mxu0 %v38
  %935 = vmatpush1.msra.mxu0 %v37
  %936 = vmatprep.subr.mxu0 %v41
  %937 = vmatpush1.msra.mxu0 %v40
  %938 = vmatprep.subr.mxu0 %v44
  %939 = vmatpush1.msra.mxu0 %v43
  %940 = vmatprep.subr.mxu0 %v47
  %941 = vmatpush1.msra.mxu0 %v46
  %942 = vmatprep.subr.mxu0 %v50
  %943 = vmatpush1.msra.mxu0 %v49
  %944 = vmatprep.subr.mxu0 %v53
  %945 = vmatpush1.msra.mxu0 %v52
  %946 = vmatprep.subr.mxu0 %v56
  %947 = vmatpush1.msra.mxu0 %v55
  %948 = vmatprep.subr.mxu0 %v59
  %949 = vmatpush1.msra.mxu0 %v58
  %950 = vmatprep.subr.mxu0 %v62
  %951 = vmatpush1.msra.mxu0 %v61
  %952 = vmatprep.subr.mxu0 %v65
  %953 = vmatpush1.msra.mxu0 %v64
  %954 = vmatprep.subr.mxu0 0.0
  %955 = vmatpush1.msra.mxu0 0.0
  %956 = vmatprep.subr.mxu0 0.0
  %957 = vmatpush1.msra.mxu0 0.0
  %958 = vmatprep.subr.mxu0 0.0
  %959 = vmatpush1.msra.mxu0 0.0
  %960 = vmatprep.subr.mxu0 0.0
  %961 = vmatpush1.msra.mxu0 0.0
  %962 = vmatprep.subr.mxu0 0.0
  %963 = vmatpush1.msra.mxu0 0.0
  %964 = vmatprep.subr.mxu0 0.0
  %965 = vmatpush1.msra.mxu0 0.0
  %966 = vmatprep.subr.mxu0 0.0
  %967 = vmatpush1.msra.mxu0 0.0
  %968 = vmatprep.subr.mxu0 0.0
  %969 = vmatpush1.msra.mxu0 0.0
  %970 = vmatprep.subr.mxu0 0.0
  %971 = vmatpush1.msra.mxu0 0.0
  %972 = vmatprep.subr.mxu0 0.0
  %973 = vmatpush1.msra.mxu0 0.0
  %974 = vmatprep.subr.mxu0 0.0
  %975 = vmatpush1.msra.mxu0 0.0
  %976 = vmatprep.subr.mxu0 0.0
  %977 = vmatpush1.msra.mxu0 0.0
  %978 = vmatprep.subr.mxu0 0.0
  %979 = vmatpush1.msra.mxu0 0.0
  %980 = vmatprep.subr.mxu0 0.0
  %981 = vmatpush1.msra.mxu0 0.0
  %982 = vmatprep.subr.mxu0 0.0
  %983 = vmatpush1.msra.mxu0 0.0
  %984 = vmatprep.subr.mxu0 0.0
  %985 = vmatpush1.msra.mxu0 0.0
  %986 = vmatprep.mubr.f32.mxu0 0.0
  %987 = vmatmul.mubr.f32.gmra.mrb[0].mxu0 %v915
  %v988 = vpop.f32.mrb[0].mxu0
  %v989 = vadd.f32 %v72, %v988
  %v990 = vpop.f32.mrb[0].mxu0
  %v991 = vadd.f32 %v76, %v990
  %992 = vdwg.mxu0
  %993 = vmatprep.subr.mxu0 0.0
  %994 = vmatpush1.msra.mxu0 %v21
  %995 = vmatprep.subr.mxu0 0.0
  %996 = vmatpush1.msra.mxu0 %v24
  %997 = vmatprep.subr.mxu0 0.0
  %998 = vmatpush1.msra.mxu0 %v27
  %999 = vmatprep.subr.mxu0 0.0
  %1000 = vmatpush1.msra.mxu0 %v30
  %1001 = vmatprep.subr.mxu0 0.0
  %1002 = vmatpush1.msra.mxu0 %v33
  %1003 = vmatprep.subr.mxu0 0.0
  %1004 = vmatpush1.msra.mxu0 %v36
  %1005 = vmatprep.subr.mxu0 0.0
  %1006 = vmatpush1.msra.mxu0 %v39
  %1007 = vmatprep.subr.mxu0 0.0
  %1008 = vmatpush1.msra.mxu0 %v42
  %1009 = vmatprep.subr.mxu0 0.0
  %1010 = vmatpush1.msra.mxu0 %v45
  %1011 = vmatprep.subr.mxu0 0.0
  %1012 = vmatpush1.msra.mxu0 %v48
  %1013 = vmatprep.subr.mxu0 0.0
  %1014 = vmatpush1.msra.mxu0 %v51
  %1015 = vmatprep.subr.mxu0 0.0
  %1016 = vmatpush1.msra.mxu0 %v54
  %1017 = vmatprep.subr.mxu0 0.0
  %1018 = vmatpush1.msra.mxu0 %v57
  %1019 = vmatprep.subr.mxu0 0.0
  %1020 = vmatpush1.msra.mxu0 %v60
  %1021 = vmatprep.subr.mxu0 0.0
  %1022 = vmatpush1.msra.mxu0 %v63
  %1023 = vmatprep.subr.mxu0 0.0
  %1024 = vmatpush1.msra.mxu0 %v66
  %1025 = vmatprep.subr.mxu0 0.0
  %1026 = vmatpush1.msra.mxu0 0.0
  %1027 = vmatprep.subr.mxu0 0.0
  %1028 = vmatpush1.msra.mxu0 0.0
  %1029 = vmatprep.subr.mxu0 0.0
  %1030 = vmatpush1.msra.mxu0 0.0
  %1031 = vmatprep.subr.mxu0 0.0
  %1032 = vmatpush1.msra.mxu0 0.0
  %1033 = vmatprep.subr.mxu0 0.0
  %1034 = vmatpush1.msra.mxu0 0.0
  %1035 = vmatprep.subr.mxu0 0.0
  %1036 = vmatpush1.msra.mxu0 0.0
  %1037 = vmatprep.subr.mxu0 0.0
  %1038 = vmatpush1.msra.mxu0 0.0
  %1039 = vmatprep.subr.mxu0 0.0
  %1040 = vmatpush1.msra.mxu0 0.0
  %1041 = vmatprep.subr.mxu0 0.0
  %1042 = vmatpush1.msra.mxu0 0.0
  %1043 = vmatprep.subr.mxu0 0.0
  %1044 = vmatpush1.msra.mxu0 0.0
  %1045 = vmatprep.subr.mxu0 0.0
  %1046 = vmatpush1.msra.mxu0 0.0
  %1047 = vmatprep.subr.mxu0 0.0
  %1048 = vmatpush1.msra.mxu0 0.0
  %1049 = vmatprep.subr.mxu0 0.0
  %1050 = vmatpush1.msra.mxu0 0.0
  %1051 = vmatprep.subr.mxu0 0.0
  %1052 = vmatpush1.msra.mxu0 0.0
  %1053 = vmatprep.subr.mxu0 0.0
  %1054 = vmatpush1.msra.mxu0 0.0
  %1055 = vmatprep.subr.mxu0 0.0
  %1056 = vmatpush1.msra.mxu0 0.0
  %1057 = vmatprep.mubr.f32.mxu0 0.0
  %1058 = vmatmul.mubr.f32.gmra.mrb[0].mxu0 %v915
  %v1059 = vpop.f32.mrb[0].mxu0
  %v1060 = vadd.f32 %v80, %v1059
  %v1061 = vpop.f32.mrb[0].mxu0
  %1062 = vdwg.mxu0
  %v1063 = vadd.f32 %v919, %v989
  %v1064 = vxor.u32 %v1063, 2147483648
  %v1065 = vmul.f32 %v1064, 1.442695
  %v1066 = vpow.pop %v1065
  %v1067 = vadd.f32 %v1066, 1.0
  %v1068 = vrcp.pop %v1067
  %v1069 = vmul.f32 1.0, %v1068
  %v1070 = vadd.f32 %v920, %v991
  %v1071 = vxor.u32 %v1070, 2147483648
  %v1072 = vmul.f32 %v1071, 1.442695
  %v1073 = vpow.pop %v1072
  %v1074 = vadd.f32 %v1073, 1.0
  %v1075 = vrcp.pop %v1074
  %v1076 = vmul.f32 1.0, %v1075
  %v1077 = vmul.f32 %v1069, %v1060
  %v1078 = vadd.f32 %v921, %v1077
  %v1079 = vtanh.pop %v1078
  %v1080 = vsub.f32 %v915, %v1079
  %v1081 = vmul.f32 %v1076, %v1080
  %v1082 = vadd.f32 %v1079, %v1081
  %s1083 = scalar_lea.vmem %s3, 40
  %1084 = vst [vmem:[%s1083] sm:$0xff] %v1082
  %s1085 = scalar_lea.vmem %s0, 144
  %v1086 = vld [vmem:[%s1085] sm:$0xff]
  %v1087 = vld [vmem:[%s1085 + $0x8] sm:$0xff]
  %v1088 = vld [vmem:[%s1085 + $0x10] sm:$0xff]
  %1089 = vmatprep.subr.mxu0 %v20
  %1090 = vmatpush1.msra.mxu0 %v19
  %1091 = vmatprep.subr.mxu0 %v23
  %1092 = vmatpush1.msra.mxu0 %v22
  %1093 = vmatprep.subr.mxu0 %v26
  %1094 = vmatpush1.msra.mxu0 %v25
  %1095 = vmatprep.subr.mxu0 %v29
  %1096 = vmatpush1.msra.mxu0 %v28
  %1097 = vmatprep.subr.mxu0 %v32
  %1098 = vmatpush1.msra.mxu0 %v31
  %1099 = vmatprep.subr.mxu0 %v35
  %1100 = vmatpush1.msra.mxu0 %v34
  %1101 = vmatprep.subr.mxu0 %v38
  %1102 = vmatpush1.msra.mxu0 %v37
  %1103 = vmatprep.subr.mxu0 %v41
  %1104 = vmatpush1.msra.mxu0 %v40
  %1105 = vmatprep.subr.mxu0 %v44
  %1106 = vmatpush1.msra.mxu0 %v43
  %1107 = vmatprep.subr.mxu0 %v47
  %1108 = vmatpush1.msra.mxu0 %v46
  %1109 = vmatprep.subr.mxu0 %v50
  %1110 = vmatpush1.msra.mxu0 %v49
  %1111 = vmatprep.subr.mxu0 %v53
  %1112 = vmatpush1.msra.mxu0 %v52
  %1113 = vmatprep.subr.mxu0 %v56
  %1114 = vmatpush1.msra.mxu0 %v55
  %1115 = vmatprep.subr.mxu0 %v59
  %1116 = vmatpush1.msra.mxu0 %v58
  %1117 = vmatprep.subr.mxu0 %v62
  %1118 = vmatpush1.msra.mxu0 %v61
  %1119 = vmatprep.subr.mxu0 %v65
  %1120 = vmatpush1.msra.mxu0 %v64
  %1121 = vmatprep.subr.mxu0 0.0
  %1122 = vmatpush1.msra.mxu0 0.0
  %1123 = vmatprep.subr.mxu0 0.0
  %1124 = vmatpush1.msra.mxu0 0.0
  %1125 = vmatprep.subr.mxu0 0.0
  %1126 = vmatpush1.msra.mxu0 0.0
  %1127 = vmatprep.subr.mxu0 0.0
  %1128 = vmatpush1.msra.mxu0 0.0
  %1129 = vmatprep.subr.mxu0 0.0
  %1130 = vmatpush1.msra.mxu0 0.0
  %1131 = vmatprep.subr.mxu0 0.0
  %1132 = vmatpush1.msra.mxu0 0.0
  %1133 = vmatprep.subr.mxu0 0.0
  %1134 = vmatpush1.msra.mxu0 0.0
  %1135 = vmatprep.subr.mxu0 0.0
  %1136 = vmatpush1.msra.mxu0 0.0
  %1137 = vmatprep.subr.mxu0 0.0
  %1138 = vmatpush1.msra.mxu0 0.0
  %1139 = vmatprep.subr.mxu0 0.0
  %1140 = vmatpush1.msra.mxu0 0.0
  %1141 = vmatprep.subr.mxu0 0.0
  %1142 = vmatpush1.msra.mxu0 0.0
  %1143 = vmatprep.subr.mxu0 0.0
  %1144 = vmatpush1.msra.mxu0 0.0
  %1145 = vmatprep.subr.mxu0 0.0
  %1146 = vmatpush1.msra.mxu0 0.0
  %1147 = vmatprep.subr.mxu0 0.0
  %1148 = vmatpush1.msra.mxu0 0.0
  %1149 = vmatprep.subr.mxu0 0.0
  %1150 = vmatpush1.msra.mxu0 0.0
  %1151 = vmatprep.subr.mxu0 0.0
  %1152 = vmatpush1.msra.mxu0 0.0
  %1153 = vmatprep.mubr.f32.mxu0 0.0
  %1154 = vmatmul.mubr.f32.gmra.mrb[0].mxu0 %v1082
  %v1155 = vpop.f32.mrb[0].mxu0
  %v1156 = vadd.f32 %v72, %v1155
  %v1157 = vpop.f32.mrb[0].mxu0
  %v1158 = vadd.f32 %v76, %v1157
  %1159 = vdwg.mxu0
  %1160 = vmatprep.subr.mxu0 0.0
  %1161 = vmatpush1.msra.mxu0 %v21
  %1162 = vmatprep.subr.mxu0 0.0
  %1163 = vmatpush1.msra.mxu0 %v24
  %1164 = vmatprep.subr.mxu0 0.0
  %1165 = vmatpush1.msra.mxu0 %v27
  %1166 = vmatprep.subr.mxu0 0.0
  %1167 = vmatpush1.msra.mxu0 %v30
  %1168 = vmatprep.subr.mxu0 0.0
  %1169 = vmatpush1.msra.mxu0 %v33
  %1170 = vmatprep.subr.mxu0 0.0
  %1171 = vmatpush1.msra.mxu0 %v36
  %1172 = vmatprep.subr.mxu0 0.0
  %1173 = vmatpush1.msra.mxu0 %v39
  %1174 = vmatprep.subr.mxu0 0.0
  %1175 = vmatpush1.msra.mxu0 %v42
  %1176 = vmatprep.subr.mxu0 0.0
  %1177 = vmatpush1.msra.mxu0 %v45
  %1178 = vmatprep.subr.mxu0 0.0
  %1179 = vmatpush1.msra.mxu0 %v48
  %1180 = vmatprep.subr.mxu0 0.0
  %1181 = vmatpush1.msra.mxu0 %v51
  %1182 = vmatprep.subr.mxu0 0.0
  %1183 = vmatpush1.msra.mxu0 %v54
  %1184 = vmatprep.subr.mxu0 0.0
  %1185 = vmatpush1.msra.mxu0 %v57
  %1186 = vmatprep.subr.mxu0 0.0
  %1187 = vmatpush1.msra.mxu0 %v60
  %1188 = vmatprep.subr.mxu0 0.0
  %1189 = vmatpush1.msra.mxu0 %v63
  %1190 = vmatprep.subr.mxu0 0.0
  %1191 = vmatpush1.msra.mxu0 %v66
  %1192 = vmatprep.subr.mxu0 0.0
  %1193 = vmatpush1.msra.mxu0 0.0
  %1194 = vmatprep.subr.mxu0 0.0
  %1195 = vmatpush1.msra.mxu0 0.0
  %1196 = vmatprep.subr.mxu0 0.0
  %1197 = vmatpush1.msra.mxu0 0.0
  %1198 = vmatprep.subr.mxu0 0.0
  %1199 = vmatpush1.msra.mxu0 0.0
  %1200 = vmatprep.subr.mxu0 0.0
  %1201 = vmatpush1.msra.mxu0 0.0
  %1202 = vmatprep.subr.mxu0 0.0
  %1203 = vmatpush1.msra.mxu0 0.0
  %1204 = vmatprep.subr.mxu0 0.0
  %1205 = vmatpush1.msra.mxu0 0.0
  %1206 = vmatprep.subr.mxu0 0.0
  %1207 = vmatpush1.msra.mxu0 0.0
  %1208 = vmatprep.subr.mxu0 0.0
  %1209 = vmatpush1.msra.mxu0 0.0
  %1210 = vmatprep.subr.mxu0 0.0
  %1211 = vmatpush1.msra.mxu0 0.0
  %1212 = vmatprep.subr.mxu0 0.0
  %1213 = vmatpush1.msra.mxu0 0.0
  %1214 = vmatprep.subr.mxu0 0.0
  %1215 = vmatpush1.msra.mxu0 0.0
  %1216 = vmatprep.subr.mxu0 0.0
  %1217 = vmatpush1.msra.mxu0 0.0
  %1218 = vmatprep.subr.mxu0 0.0
  %1219 = vmatpush1.msra.mxu0 0.0
  %1220 = vmatprep.subr.mxu0 0.0
  %1221 = vmatpush1.msra.mxu0 0.0
  %1222 = vmatprep.subr.mxu0 0.0
  %1223 = vmatpush1.msra.mxu0 0.0
  %1224 = vmatprep.mubr.f32.mxu0 0.0
  %1225 = vmatmul.mubr.f32.gmra.mrb[0].mxu0 %v1082
  %v1226 = vpop.f32.mrb[0].mxu0
  %v1227 = vadd.f32 %v80, %v1226
  %v1228 = vpop.f32.mrb[0].mxu0
  %1229 = vdwg.mxu0
  %v1230 = vadd.f32 %v1086, %v1156
  %v1231 = vxor.u32 %v1230, 2147483648
  %v1232 = vmul.f32 %v1231, 1.442695
  %v1233 = vpow.pop %v1232
  %v1234 = vadd.f32 %v1233, 1.0
  %v1235 = vrcp.pop %v1234
  %v1236 = vmul.f32 1.0, %v1235
  %v1237 = vadd.f32 %v1087, %v1158
  %v1238 = vxor.u32 %v1237, 2147483648
  %v1239 = vmul.f32 %v1238, 1.442695
  %v1240 = vpow.pop %v1239
  %v1241 = vadd.f32 %v1240, 1.0
  %v1242 = vrcp.pop %v1241
  %v1243 = vmul.f32 1.0, %v1242
  %v1244 = vmul.f32 %v1236, %v1227
  %v1245 = vadd.f32 %v1088, %v1244
  %v1246 = vtanh.pop %v1245
  %v1247 = vsub.f32 %v1082, %v1246
  %v1248 = vmul.f32 %v1243, %v1247
  %v1249 = vadd.f32 %v1246, %v1248
  %s1250 = scalar_lea.vmem %s3, 48
  %1251 = vst [vmem:[%s1250] sm:$0xff] %v1249
  %s1252 = scalar_lea.vmem %s0, 168
  %v1253 = vld [vmem:[%s1252] sm:$0xff]
  %v1254 = vld [vmem:[%s1252 + $0x8] sm:$0xff]
  %v1255 = vld [vmem:[%s1252 + $0x10] sm:$0xff]
  %1256 = vmatprep.subr.mxu0 %v20
  %1257 = vmatpush1.msra.mxu0 %v19
  %1258 = vmatprep.subr.mxu0 %v23
  %1259 = vmatpush1.msra.mxu0 %v22
  %1260 = vmatprep.subr.mxu0 %v26
  %1261 = vmatpush1.msra.mxu0 %v25
  %1262 = vmatprep.subr.mxu0 %v29
  %1263 = vmatpush1.msra.mxu0 %v28
  %1264 = vmatprep.subr.mxu0 %v32
  %1265 = vmatpush1.msra.mxu0 %v31
  %1266 = vmatprep.subr.mxu0 %v35
  %1267 = vmatpush1.msra.mxu0 %v34
  %1268 = vmatprep.subr.mxu0 %v38
  %1269 = vmatpush1.msra.mxu0 %v37
  %1270 = vmatprep.subr.mxu0 %v41
  %1271 = vmatpush1.msra.mxu0 %v40
  %1272 = vmatprep.subr.mxu0 %v44
  %1273 = vmatpush1.msra.mxu0 %v43
  %1274 = vmatprep.subr.mxu0 %v47
  %1275 = vmatpush1.msra.mxu0 %v46
  %1276 = vmatprep.subr.mxu0 %v50
  %1277 = vmatpush1.msra.mxu0 %v49
  %1278 = vmatprep.subr.mxu0 %v53
  %1279 = vmatpush1.msra.mxu0 %v52
  %1280 = vmatprep.subr.mxu0 %v56
  %1281 = vmatpush1.msra.mxu0 %v55
  %1282 = vmatprep.subr.mxu0 %v59
  %1283 = vmatpush1.msra.mxu0 %v58
  %1284 = vmatprep.subr.mxu0 %v62
  %1285 = vmatpush1.msra.mxu0 %v61
  %1286 = vmatprep.subr.mxu0 %v65
  %1287 = vmatpush1.msra.mxu0 %v64
  %1288 = vmatprep.subr.mxu0 0.0
  %1289 = vmatpush1.msra.mxu0 0.0
  %1290 = vmatprep.subr.mxu0 0.0
  %1291 = vmatpush1.msra.mxu0 0.0
  %1292 = vmatprep.subr.mxu0 0.0
  %1293 = vmatpush1.msra.mxu0 0.0
  %1294 = vmatprep.subr.mxu0 0.0
  %1295 = vmatpush1.msra.mxu0 0.0
  %1296 = vmatprep.subr.mxu0 0.0
  %1297 = vmatpush1.msra.mxu0 0.0
  %1298 = vmatprep.subr.mxu0 0.0
  %1299 = vmatpush1.msra.mxu0 0.0
  %1300 = vmatprep.subr.mxu0 0.0
  %1301 = vmatpush1.msra.mxu0 0.0
  %1302 = vmatprep.subr.mxu0 0.0
  %1303 = vmatpush1.msra.mxu0 0.0
  %1304 = vmatprep.subr.mxu0 0.0
  %1305 = vmatpush1.msra.mxu0 0.0
  %1306 = vmatprep.subr.mxu0 0.0
  %1307 = vmatpush1.msra.mxu0 0.0
  %1308 = vmatprep.subr.mxu0 0.0
  %1309 = vmatpush1.msra.mxu0 0.0
  %1310 = vmatprep.subr.mxu0 0.0
  %1311 = vmatpush1.msra.mxu0 0.0
  %1312 = vmatprep.subr.mxu0 0.0
  %1313 = vmatpush1.msra.mxu0 0.0
  %1314 = vmatprep.subr.mxu0 0.0
  %1315 = vmatpush1.msra.mxu0 0.0
  %1316 = vmatprep.subr.mxu0 0.0
  %1317 = vmatpush1.msra.mxu0 0.0
  %1318 = vmatprep.subr.mxu0 0.0
  %1319 = vmatpush1.msra.mxu0 0.0
  %1320 = vmatprep.mubr.f32.mxu0 0.0
  %1321 = vmatmul.mubr.f32.gmra.mrb[0].mxu0 %v1249
  %v1322 = vpop.f32.mrb[0].mxu0
  %v1323 = vadd.f32 %v72, %v1322
  %v1324 = vpop.f32.mrb[0].mxu0
  %v1325 = vadd.f32 %v76, %v1324
  %1326 = vdwg.mxu0
  %1327 = vmatprep.subr.mxu0 0.0
  %1328 = vmatpush1.msra.mxu0 %v21
  %1329 = vmatprep.subr.mxu0 0.0
  %1330 = vmatpush1.msra.mxu0 %v24
  %1331 = vmatprep.subr.mxu0 0.0
  %1332 = vmatpush1.msra.mxu0 %v27
  %1333 = vmatprep.subr.mxu0 0.0
  %1334 = vmatpush1.msra.mxu0 %v30
  %1335 = vmatprep.subr.mxu0 0.0
  %1336 = vmatpush1.msra.mxu0 %v33
  %1337 = vmatprep.subr.mxu0 0.0
  %1338 = vmatpush1.msra.mxu0 %v36
  %1339 = vmatprep.subr.mxu0 0.0
  %1340 = vmatpush1.msra.mxu0 %v39
  %1341 = vmatprep.subr.mxu0 0.0
  %1342 = vmatpush1.msra.mxu0 %v42
  %1343 = vmatprep.subr.mxu0 0.0
  %1344 = vmatpush1.msra.mxu0 %v45
  %1345 = vmatprep.subr.mxu0 0.0
  %1346 = vmatpush1.msra.mxu0 %v48
  %1347 = vmatprep.subr.mxu0 0.0
  %1348 = vmatpush1.msra.mxu0 %v51
  %1349 = vmatprep.subr.mxu0 0.0
  %1350 = vmatpush1.msra.mxu0 %v54
  %1351 = vmatprep.subr.mxu0 0.0
  %1352 = vmatpush1.msra.mxu0 %v57
  %1353 = vmatprep.subr.mxu0 0.0
  %1354 = vmatpush1.msra.mxu0 %v60
  %1355 = vmatprep.subr.mxu0 0.0
  %1356 = vmatpush1.msra.mxu0 %v63
  %1357 = vmatprep.subr.mxu0 0.0
  %1358 = vmatpush1.msra.mxu0 %v66
  %1359 = vmatprep.subr.mxu0 0.0
  %1360 = vmatpush1.msra.mxu0 0.0
  %1361 = vmatprep.subr.mxu0 0.0
  %1362 = vmatpush1.msra.mxu0 0.0
  %1363 = vmatprep.subr.mxu0 0.0
  %1364 = vmatpush1.msra.mxu0 0.0
  %1365 = vmatprep.subr.mxu0 0.0
  %1366 = vmatpush1.msra.mxu0 0.0
  %1367 = vmatprep.subr.mxu0 0.0
  %1368 = vmatpush1.msra.mxu0 0.0
  %1369 = vmatprep.subr.mxu0 0.0
  %1370 = vmatpush1.msra.mxu0 0.0
  %1371 = vmatprep.subr.mxu0 0.0
  %1372 = vmatpush1.msra.mxu0 0.0
  %1373 = vmatprep.subr.mxu0 0.0
  %1374 = vmatpush1.msra.mxu0 0.0
  %1375 = vmatprep.subr.mxu0 0.0
  %1376 = vmatpush1.msra.mxu0 0.0
  %1377 = vmatprep.subr.mxu0 0.0
  %1378 = vmatpush1.msra.mxu0 0.0
  %1379 = vmatprep.subr.mxu0 0.0
  %1380 = vmatpush1.msra.mxu0 0.0
  %1381 = vmatprep.subr.mxu0 0.0
  %1382 = vmatpush1.msra.mxu0 0.0
  %1383 = vmatprep.subr.mxu0 0.0
  %1384 = vmatpush1.msra.mxu0 0.0
  %1385 = vmatprep.subr.mxu0 0.0
  %1386 = vmatpush1.msra.mxu0 0.0
  %1387 = vmatprep.subr.mxu0 0.0
  %1388 = vmatpush1.msra.mxu0 0.0
  %1389 = vmatprep.subr.mxu0 0.0
  %1390 = vmatpush1.msra.mxu0 0.0
  %1391 = vmatprep.mubr.f32.mxu0 0.0
  %1392 = vmatmul.mubr.f32.gmra.mrb[0].mxu0 %v1249
  %v1393 = vpop.f32.mrb[0].mxu0
  %v1394 = vadd.f32 %v80, %v1393
  %v1395 = vpop.f32.mrb[0].mxu0
  %1396 = vdwg.mxu0
  %v1397 = vadd.f32 %v1253, %v1323
  %v1398 = vxor.u32 %v1397, 2147483648
  %v1399 = vmul.f32 %v1398, 1.442695
  %v1400 = vpow.pop %v1399
  %v1401 = vadd.f32 %v1400, 1.0
  %v1402 = vrcp.pop %v1401
  %v1403 = vmul.f32 1.0, %v1402
  %v1404 = vadd.f32 %v1254, %v1325
  %v1405 = vxor.u32 %v1404, 2147483648
  %v1406 = vmul.f32 %v1405, 1.442695
  %v1407 = vpow.pop %v1406
  %v1408 = vadd.f32 %v1407, 1.0
  %v1409 = vrcp.pop %v1408
  %v1410 = vmul.f32 1.0, %v1409
  %v1411 = vmul.f32 %v1403, %v1394
  %v1412 = vadd.f32 %v1255, %v1411
  %v1413 = vtanh.pop %v1412
  %v1414 = vsub.f32 %v1249, %v1413
  %v1415 = vmul.f32 %v1410, %v1414
  %v1416 = vadd.f32 %v1413, %v1415
  %s1417 = scalar_lea.vmem %s3, 56
  %1418 = vst [vmem:[%s1417] sm:$0xff] %v1416
  %1419 = vst [vmem:[#allocation2] sm:$0xff] %v1416
  // Predicated region
  $region18: #{r2dgru_forward.2} parent=0 // pred_check
    _
  $region19: #{r2dgru_forward.2} parent=0 // pred_check_branch
    %1421 = sbr.rel (0) target = $region21
  $region20: #{r2dgru_forward.2} parent=0 // pred_region
    _
  $region21: #{r2dgru_forward.2} parent=0 // pred_fallthru
    _
  // Predicated region
  $region22: #{r2dgru_forward.2} parent=0 // pred_check
    _
  $region23: #{r2dgru_forward.2} parent=0 // pred_check_branch
    %1423 = sbr.rel (0) target = $region25
  $region24: #{r2dgru_forward.2} parent=0 // pred_region
    _
  $region25: #{r2dgru_forward.2} parent=0 // pred_fallthru
    _

</llo_original>
